<compile_context>
chip_gen: v6e
topology: v6e:2x2x1
jax: 0.10.0
libtpu: 0.0.40
codegen_flags: <defaults>
</compile_context>

<pallas_src>
import jax
import jax.numpy as jnp
from jax.experimental import pallas as pl
from jax.experimental.pallas import tpu as pltpu


def _generator_kernel(x_ref, w1_ref, b1_ref, w2t_ref, bf_ref, o_ref):
    # Per grid step (all operands f32):
    #   x_ref  : (TN, P*Lp)     lane-packed rows (patch axis folded into lanes)
    #   w1_ref : (P*Lp, P*H)    block-diagonal first-Linear weight
    #   b1_ref : (1, P*H)       first-Linear bias tiled P times
    #   w2t_ref: (Lout, P*H)    second-Linear weight with w3 folded in, transposed
    #   bf_ref : (Lout, 1)      fused bias = sum(w3)*b2 + b3
    #   o_ref  : (Lout, TN)     transposed output block (lane axis = row tile)
    prec = jax.lax.Precision.HIGHEST

    # (1) First Linear as a single MXU-shaped matmul, then bias + LeakyReLU(0.2).
    h = jnp.dot(x_ref[...], w1_ref[...],
                preferred_element_type=jnp.float32, precision=prec)
    h = h + b1_ref[...]
    h = jnp.maximum(h, 0.2 * h)                                   # LeakyReLU(0.2)

    # (2) Second Linear + out_layer reduction as one NT matmul, emitted
    #     transposed so the output's lane axis is the (128-multiple) row tile:
    #     out_T[l, t] = sum_{p,h} w3[p] * w2[h, l] * act[t, p*H + h]
    out_t = jax.lax.dot_general(
        w2t_ref[...], h,
        dimension_numbers=(((1,), (1,)), ((), ())),
        preferred_element_type=jnp.float32, precision=prec)       # (Lout, TN)

    o_ref[...] = (out_t + bf_ref[...]).astype(o_ref.dtype)


_MAX_TN = 2048  # packed x block = tn * (P*Lp) * 4 B  -> 1 MiB at tn=2048, P*Lp=128


def _choose_row_tile(n):
    """Pick (tn, n_pad): tn is a multiple of 128 (lane-dense transposed output
    stores), divides n_pad exactly, and n_pad pads n by at most 127 rows (zero
    padding when n is already a multiple of 128)."""
    n_pad = -(-n // 128) * 128
    tn = 128
    for cand in range(min(_MAX_TN, n_pad), 127, -128):
        if n_pad % cand == 0:
            tn = cand
            break
    return tn, n_pad


@jax.jit
def generator_forward(x, w1, b1, w2, b2, w3, b3):
    """x: [B, n_vars, patch_num, patch_len] -> [B, pred_len, n_vars]."""
    B, C, P, Lp = x.shape
    H = w1.shape[1]
    Lout = w2.shape[1]
    N = B * C

    tn, n_pad = _choose_row_tile(N)
    num_blocks = n_pad // tn

    # Lane-pack the patch axis: row t = flattened (batch, var), cols = p*Lp + l.
    x2d = x.reshape(N, P * Lp)
    if n_pad != N:
        x2d = jnp.pad(x2d, ((0, n_pad - N), (0, 0)))   # < 128 extra rows, tiny

    # Block-diagonal first-Linear weight: W1_big[p*Lp+l, q*H+h] = (p==q)*w1[l,h].
    eye_p = jnp.eye(P, dtype=w1.dtype)
    w1_big = jnp.einsum("pq,lh->plqh", eye_p, w1).reshape(P * Lp, P * H)
    b1_big = jnp.tile(b1, P).reshape(1, P * H)          # b1_big[p*H+h] = b1[h]

    # Second-Linear weight with out_layer folded in (transposed for NT matmul):
    # W2T_big[l, p*H+h] = w3[p] * w2[h, l];  fused bias = sum(w3)*b2 + b3.
    w2t_big = jnp.einsum("p,hl->lph", w3, w2).reshape(Lout, P * H)
    bias_fused = (jnp.sum(w3) * b2 + b3).reshape(Lout, 1)

    out_t = pl.pallas_call(
        _generator_kernel,
        out_shape=jax.ShapeDtypeStruct((Lout, n_pad), jnp.float32),
        grid_spec=pltpu.PrefetchScalarGridSpec(
            num_scalar_prefetch=0,
            grid=(num_blocks,),
            in_specs=[
                pl.BlockSpec((tn, P * Lp), lambda i: (i, 0)),     # x rows (packed)
                pl.BlockSpec((P * Lp, P * H), lambda i: (0, 0)),  # block-diag W1
                pl.BlockSpec((1, P * H), lambda i: (0, 0)),       # tiled b1
                pl.BlockSpec((Lout, P * H), lambda i: (0, 0)),    # w3-folded W2^T
                pl.BlockSpec((Lout, 1), lambda i: (0, 0)),        # fused bias
            ],
            out_specs=pl.BlockSpec((Lout, tn), lambda i: (0, i)),
        ),
        compiler_params=pltpu.CompilerParams(
            dimension_semantics=("parallel",)),
    )(x2d, w1_big, b1_big, w2t_big, bias_fused)

    out_t = out_t[:, :N]                       # (Lout, N)  drop row padding
    out = out_t.reshape(Lout, B, C)            # split N -> (B, n_vars)
    return jnp.transpose(out, (1, 0, 2))       # [B, pred_len, n_vars]


def _reference_forward(x, w1, b1, w2, b2, w3, b3):
    """Pure-JAX reference mirroring the PyTorch forward (eval mode)."""
    prec = jax.lax.Precision.HIGHEST
    h = jnp.einsum("bcpl,lh->bcph", x, w1, precision=prec) + b1
    h = jnp.where(h > 0, h, 0.2 * h)
    y = jnp.einsum("bcph,ho->bcpo", h, w2, precision=prec) + b2   # [B,C,P,pred]
    yt = jnp.swapaxes(y, -1, -2)                                   # [B,C,pred,P]
    z = jnp.einsum("bcop,p->bco", yt, w3, precision=prec) + b3     # [B,C,pred]
    return jnp.swapaxes(z, -1, -2)                                 # [B,pred,C]


def _init_linear(key, fan_in, fan_out):
    # Deterministic init, PyTorch-style uniform(-1/sqrt(fan_in), 1/sqrt(fan_in)).
    kw, kb = jax.random.split(key)
    bound = 1.0 / (fan_in ** 0.5)
    w = jax.random.uniform(kw, (fan_in, fan_out), jnp.float32, -bound, bound)
    b = jax.random.uniform(kb, (fan_out,), jnp.float32, -bound, bound)
    return w, b


if __name__ == "__main__":
    # Small shapes implied by the module (expConfig / args):
    B, n_vars = 2, 4
    patch_num, patch_len = 8, 16
    hidden_dim, pred_len = 32, 24

    key = jax.random.PRNGKey(0)
    kx, k1, k2, k3 = jax.random.split(key, 4)

    x = jax.random.normal(kx, (B, n_vars, patch_num, patch_len), jnp.float32)

    w1, b1 = _init_linear(k1, patch_len, hidden_dim)    # Linear(patch_len, hidden_dim)
    w2, b2 = _init_linear(k2, hidden_dim, pred_len)     # Linear(hidden_dim, pred_len)
    w3_full, b3_full = _init_linear(k3, patch_num, 1)   # Linear(patch_num, 1)
    w3 = w3_full[:, 0]                                  # (patch_num,)
    b3 = b3_full                                        # (1,)

    out = generator_forward(x, w1, b1, w2, b2, w3, b3)
    out = jax.block_until_ready(out)

    ref = _reference_forward(x, w1, b1, w2, b2, w3, b3)
    assert out.shape == (B, pred_len, n_vars), out.shape
    assert jnp.allclose(out, ref, atol=1e-5, rtol=1e-5), "mismatch vs reference"

    print("KERNEL_OK")
</pallas_src>

<mosaic_0001>
module attributes {stable_mosaic.version = 11 : i64} {
  func.func @_generator_kernel(%arg0: i32, %arg1: memref<128x128xf32, #tpu.memory_space<vmem>>, %arg2: memref<128x256xf32, #tpu.memory_space<vmem>>, %arg3: memref<1x256xf32, #tpu.memory_space<vmem>>, %arg4: memref<24x256xf32, #tpu.memory_space<vmem>>, %arg5: memref<24x1xf32, #tpu.memory_space<vmem>>, %arg6: memref<24x128xf32, #tpu.memory_space<vmem>>) attributes {dimension_semantics = [#tpu.dimension_semantics<parallel>], iteration_bounds = array<i64: 1>, scalar_prefetch = 0 : i64, scratch_operands = 0 : i64, tpu.core_type = #tpu.core_type<tc>, window_params = [{transform_indices = @transform_0, window_bounds = array<i64: 128, 128>}, {pipeline_mode = #tpu.pipeline_mode<synchronous>, transform_indices = @transform_1, window_bounds = array<i64: 128, 256>}, {pipeline_mode = #tpu.pipeline_mode<synchronous>, transform_indices = @transform_2, window_bounds = array<i64: 1, 256>}, {pipeline_mode = #tpu.pipeline_mode<synchronous>, transform_indices = @transform_3, window_bounds = array<i64: 24, 256>}, {pipeline_mode = #tpu.pipeline_mode<synchronous>, transform_indices = @transform_4, window_bounds = array<i64: 24, 1>}, {transform_indices = @transform_5, window_bounds = array<i64: 24, 128>}]} {
    %c0 = arith.constant 0 : index
    %c0_0 = arith.constant 0 : index
    %0 = vector.load %arg1[%c0, %c0_0] : memref<128x128xf32, #tpu.memory_space<vmem>>, vector<128x128xf32>
    %c0_1 = arith.constant 0 : index
    %c0_2 = arith.constant 0 : index
    %1 = vector.load %arg2[%c0_1, %c0_2] : memref<128x256xf32, #tpu.memory_space<vmem>>, vector<128x256xf32>
    %cst = arith.constant dense<0.000000e+00> : vector<128x256xf32>
    %2 = tpu.matmul %0, %1, %cst {dimension_numbers = #tpu.dot_dimension_numbers<[1], [0], [0], [1], [0, 0, 1, 1], [], []>, precision = #tpu.contract_precision<fp32>} : vector<128x128xf32>, vector<128x256xf32>, vector<128x256xf32> -> vector<128x256xf32>
    %c0_3 = arith.constant 0 : index
    %c0_4 = arith.constant 0 : index
    %3 = vector.load %arg3[%c0_3, %c0_4] : memref<1x256xf32, #tpu.memory_space<vmem>>, vector<1x256xf32>
    %4 = vector.broadcast %3 : vector<1x256xf32> to vector<128x256xf32>
    %5 = arith.addf %2, %4 : vector<128x256xf32>
    %cst_5 = arith.constant 2.000000e-01 : f32
    %6 = vector.broadcast %cst_5 : f32 to vector<128x256xf32>
    %7 = arith.mulf %6, %5 : vector<128x256xf32>
    %8 = arith.maximumf %5, %7 : vector<128x256xf32>
    %c0_6 = arith.constant 0 : index
    %c0_7 = arith.constant 0 : index
    %9 = vector.load %arg4[%c0_6, %c0_7] : memref<24x256xf32, #tpu.memory_space<vmem>>, vector<24x256xf32>
    %cst_8 = arith.constant dense<0.000000e+00> : vector<24x128xf32>
    %10 = tpu.matmul %9, %8, %cst_8 {dimension_numbers = #tpu.dot_dimension_numbers<[1], [1], [0], [0], [0, 0, 1, 0], [], []>, precision = #tpu.contract_precision<fp32>} : vector<24x256xf32>, vector<128x256xf32>, vector<24x128xf32> -> vector<24x128xf32>
    %c0_9 = arith.constant 0 : index
    %c0_10 = arith.constant 0 : index
    %11 = vector.load %arg5[%c0_9, %c0_10] : memref<24x1xf32, #tpu.memory_space<vmem>>, vector<24x1xf32>
    %12 = vector.broadcast %11 : vector<24x1xf32> to vector<24x128xf32>
    %13 = arith.addf %10, %12 : vector<24x128xf32>
    %c0_11 = arith.constant 0 : index
    %c0_12 = arith.constant 0 : index
    %14 = vector.load %arg6[%c0_11, %c0_12] : memref<24x128xf32, #tpu.memory_space<vmem>>, vector<24x128xf32>
    tpu.vector_store %arg6[%c0_11, %c0_12], %13 {strides = array<i32>} : memref<24x128xf32, #tpu.memory_space<vmem>>, vector<24x128xf32>,
    return
  }
  func.func @transform_0(%arg0: i32) -> (i32, i32) {
    %c0_i32 = arith.constant 0 : i32
    %c0_i32_0 = arith.constant 0 : i32
    return %arg0, %c0_i32 : i32, i32
  }
  func.func @transform_1(%arg0: i32) -> (i32, i32) {
    %c0_i32 = arith.constant 0 : i32
    %c0_i32_0 = arith.constant 0 : i32
    %c0_i32_1 = arith.constant 0 : i32
    return %c0_i32, %c0_i32_0 : i32, i32
  }
  func.func @transform_2(%arg0: i32) -> (i32, i32) {
    %c0_i32 = arith.constant 0 : i32
    %c0_i32_0 = arith.constant 0 : i32
    %c0_i32_1 = arith.constant 0 : i32
    return %c0_i32, %c0_i32_0 : i32, i32
  }
  func.func @transform_3(%arg0: i32) -> (i32, i32) {
    %c0_i32 = arith.constant 0 : i32
    %c0_i32_0 = arith.constant 0 : i32
    %c0_i32_1 = arith.constant 0 : i32
    return %c0_i32, %c0_i32_0 : i32, i32
  }
  func.func @transform_4(%arg0: i32) -> (i32, i32) {
    %c0_i32 = arith.constant 0 : i32
    %c0_i32_0 = arith.constant 0 : i32
    %c0_i32_1 = arith.constant 0 : i32
    return %c0_i32, %c0_i32_0 : i32, i32
  }
  func.func @transform_5(%arg0: i32) -> (i32, i32) {
    %c0_i32 = arith.constant 0 : i32
    %c0_i32_0 = arith.constant 0 : i32
    return %c0_i32, %arg0 : i32, i32
  }
}

</mosaic_0001>

<llo_original>
// kernel: tile.8
$region0: #{tile.8}
  #allocation0 [shape = 's32[1]{0}', space=sflag, size = 0x4, scoped, tag = 'scoped memory for tile.8']
  %s0 = inlined_call_operand.vmem [shape: f32[32], index: 0, kind: input, shape index: {}]
  %s1 = inlined_call_operand.vmem [shape: f32[8,32], index: 1, kind: output, shape index: {}]
  // Predicated region
  $region2: #{tile.8} parent=0 // pred_check
    _
  $region3: #{tile.8} parent=0 // pred_check_branch
    %3 = sbr.rel (0) target = $region5
  $region4: #{tile.8} parent=0 // pred_region
    _
  $region5: #{tile.8} parent=0 // pred_fallthru
    _
  %v4 = vld [vmem:[%s0] ss:$0 sm:$0xff]
  %5 = vst [vmem:[%s1] sm:$0xff] %v4

// kernel: tile.9
$region0: #{tile.9}
  %s0 = inlined_call_operand.vmem [shape: f32[8,32], index: 0, kind: input, shape index: {}]
  %s1 = inlined_call_operand.vmem [shape: f32[1,256], index: 1, kind: output, shape index: {}]
  $region1: #{tile.9} parent=0
    #allocation0 [shape = 'u8[8192]{0}', space=vmem, size = 0x2000, scoped, tag = 'scoped mem for output reshape']
    %s2 = smov 3
    %v3 = vld [vmem:[%s0] ss:$4 sm:%s2]
    %vm4 = vcmask 261120
    %5 = vst.msk [vmem:[#allocation0] ss:$8 sm:$0x3] %vm4, %v3
    %s6 = scalar_lea.vmem %s0, 3
    %s7 = smov 3
    %v8 = vld [vmem:[%s6] ss:$4 sm:%s7]
    %9 = vrot.lane.b32.xlu0 %v8, 96
    %v10 = vpop.permute.xlu0 %9
    %vm11 = vcmask 1048320
    %12 = vst.msk [vmem:[#allocation0] ss:$8 sm:$0x3] %vm11, %v10
    %s13 = scalar_lea.vmem %s0, 2
    %s14 = smov 3
    %v15 = vld [vmem:[%s13] ss:$4 sm:%s14]
    %16 = vrot.lane.b32.xlu0 %v15, 64
    %v17 = vpop.permute.xlu0 %16
    %vm18 = vcmask 785920
    %19 = vst.msk [vmem:[#allocation0] ss:$8 sm:$0x3] %vm18, %v17
    %s20 = scalar_lea.vmem %s0, 1
    %s21 = smov 3
    %v22 = vld [vmem:[%s20] ss:$4 sm:%s21]
    %23 = vrot.lane.b32.xlu0 %v22, 32
    %v24 = vpop.permute.xlu0 %23
    %vm25 = vcmask 523520
    %26 = vst.msk [vmem:[#allocation0] ss:$8 sm:$0x3] %vm25, %v24
    %s28 = sshll.u32 1, 1
    %s29 = ssub.s32 %s28, 1
    %v31 = vld [vmem:[#allocation0] sm:%s29]
    %s32 = sshll.u32 1, 1
    %s33 = ssub.s32 %s32, 1
    %34 = vst [vmem:[%s1] sm:%s33] %v31
    %s35 = scalar_lea.vmem [#allocation0], 8
    %v36 = vld [vmem:[%s35] sm:%s29]
    %s37 = sshll.u32 1, 1
    %s38 = ssub.s32 %s37, 1
    %s39 = scalar_lea.vmem %s1, 1
    %40 = vst [vmem:[%s39] sm:%s38] %v36

// kernel: generator_forward.1
$region0: #{generator_forward.1}
  #allocation0 [shape = 'u32[]', space=smem, size = 0x4, offset = 0x4, fixed_abs, tag = 'smem constant byte address 0x4 - core index']
  #allocation1 [shape = 'u32[144,128]{1,0:T(1,128)}', space=vmem, size = 0x12000, scoped, tag = 'internal scratch']
  %s0 = inlined_call_operand.vmem [shape: f32[128,128], index: 0, kind: input, shape index: {}]
  %s1 = inlined_call_operand.vmem [shape: f32[128,256], index: 1, kind: input, shape index: {}]
  %s2 = inlined_call_operand.vmem [shape: f32[1,256], index: 2, kind: input, shape index: {}]
  %s3 = inlined_call_operand.vmem [shape: f32[24,256], index: 3, kind: input, shape index: {}]
  %s4 = inlined_call_operand.vmem [shape: f32[24,1], index: 4, kind: input, shape index: {}]
  %s5 = inlined_call_operand.vmem [shape: f32[24,128], index: 5, kind: output, shape index: {}]
  %s6 = sld [smem:[#allocation0]]
  $region30: #{generator_forward.1} parent=0
    _
  %s8 = ssub.s32 1, %s6
  %s9 = scalar_select 0, %s8, %s6
  // Predicated region
  $region2: #{generator_forward.1} parent=0 // pred_check
    _
  $region3: #{generator_forward.1} parent=0 // pred_check_branch
    %11 = sbr.rel (0) target = $region5
  $region4: #{generator_forward.1} parent=0 // pred_region
    _
  $region5: #{generator_forward.1} parent=0 // pred_fallthru
    _
  // Predicated region
  $region6: #{generator_forward.1} parent=0 // pred_check
    _
  $region7: #{generator_forward.1} parent=0 // pred_check_branch
    %13 = sbr.rel (0) target = $region9
  $region8: #{generator_forward.1} parent=0 // pred_region
    _
  $region9: #{generator_forward.1} parent=0 // pred_fallthru
    _
  // Predicated region
  $region10: #{generator_forward.1} parent=0 // pred_check
    _
  $region11: #{generator_forward.1} parent=0 // pred_check_branch
    %15 = sbr.rel (0) target = $region13
  $region12: #{generator_forward.1} parent=0 // pred_region
    _
  $region13: #{generator_forward.1} parent=0 // pred_fallthru
    _
  // Predicated region
  $region14: #{generator_forward.1} parent=0 // pred_check
    _
  $region15: #{generator_forward.1} parent=0 // pred_check_branch
    %17 = sbr.rel (0) target = $region17
  $region16: #{generator_forward.1} parent=0 // pred_region
    _
  $region17: #{generator_forward.1} parent=0 // pred_fallthru
    _
  // Predicated region
  $region18: #{generator_forward.1} parent=0 // pred_check
    _
  $region19: #{generator_forward.1} parent=0 // pred_check_branch
    %19 = sbr.rel (0) target = $region21
  $region20: #{generator_forward.1} parent=0 // pred_region
    _
  $region21: #{generator_forward.1} parent=0 // pred_fallthru
    _
  %v20 = vld [vmem:[%s0] sm:$0xff]
  %v21 = vld [vmem:[%s0 + $0x8] sm:$0xff]
  %v22 = vld [vmem:[%s0 + $0x10] sm:$0xff]
  %v23 = vld [vmem:[%s0 + $0x18] sm:$0xff]
  %v24 = vld [vmem:[%s0 + $0x20] sm:$0xff]
  %v25 = vld [vmem:[%s0 + $0x28] sm:$0xff]
  %v26 = vld [vmem:[%s0 + $0x30] sm:$0xff]
  %v27 = vld [vmem:[%s0 + $0x38] sm:$0xff]
  %v28 = vld [vmem:[%s0 + $0x40] sm:$0xff]
  %v29 = vld [vmem:[%s0 + $0x48] sm:$0xff]
  %v30 = vld [vmem:[%s0 + $0x50] sm:$0xff]
  %v31 = vld [vmem:[%s0 + $0x58] sm:$0xff]
  %v32 = vld [vmem:[%s0 + $0x60] sm:$0xff]
  %v33 = vld [vmem:[%s0 + $0x68] sm:$0xff]
  %v34 = vld [vmem:[%s0 + $0x70] sm:$0xff]
  %v35 = vld [vmem:[%s0 + $0x78] sm:$0xff]
  %v36 = vld [vmem:[%s1] sm:$0xff]
  %v37 = vld [vmem:[%s1 + $0x8] sm:$0xff]
  %v38 = vld [vmem:[%s1 + $0x10] sm:$0xff]
  %v39 = vld [vmem:[%s1 + $0x18] sm:$0xff]
  %v40 = vld [vmem:[%s1 + $0x20] sm:$0xff]
  %v41 = vld [vmem:[%s1 + $0x28] sm:$0xff]
  %v42 = vld [vmem:[%s1 + $0x30] sm:$0xff]
  %v43 = vld [vmem:[%s1 + $0x38] sm:$0xff]
  %v44 = vld [vmem:[%s1 + $0x40] sm:$0xff]
  %v45 = vld [vmem:[%s1 + $0x48] sm:$0xff]
  %v46 = vld [vmem:[%s1 + $0x50] sm:$0xff]
  %v47 = vld [vmem:[%s1 + $0x58] sm:$0xff]
  %v48 = vld [vmem:[%s1 + $0x60] sm:$0xff]
  %v49 = vld [vmem:[%s1 + $0x68] sm:$0xff]
  %v50 = vld [vmem:[%s1 + $0x70] sm:$0xff]
  %v51 = vld [vmem:[%s1 + $0x78] sm:$0xff]
  %v52 = vld [vmem:[%s1 + $0x80] sm:$0xff]
  %v53 = vld [vmem:[%s1 + $0x88] sm:$0xff]
  %v54 = vld [vmem:[%s1 + $0x90] sm:$0xff]
  %v55 = vld [vmem:[%s1 + $0x98] sm:$0xff]
  %v56 = vld [vmem:[%s1 + $0xa0] sm:$0xff]
  %v57 = vld [vmem:[%s1 + $0xa8] sm:$0xff]
  %v58 = vld [vmem:[%s1 + $0xb0] sm:$0xff]
  %v59 = vld [vmem:[%s1 + $0xb8] sm:$0xff]
  %v60 = vld [vmem:[%s1 + $0xc0] sm:$0xff]
  %v61 = vld [vmem:[%s1 + $0xc8] sm:$0xff]
  %v62 = vld [vmem:[%s1 + $0xd0] sm:$0xff]
  %v63 = vld [vmem:[%s1 + $0xd8] sm:$0xff]
  %v64 = vld [vmem:[%s1 + $0xe0] sm:$0xff]
  %v65 = vld [vmem:[%s1 + $0xe8] sm:$0xff]
  %v66 = vld [vmem:[%s1 + $0xf0] sm:$0xff]
  %v67 = vld [vmem:[%s1 + $0xf8] sm:$0xff]
  %v68 = vld [vmem:[%s2] sm:$0x3]
  %v70 = vlaneseq
  %v71 = vshrl.u32 %v70, 7
  %v72 = vsub.s32 0, %v71
  %v73 = vrot.slane %v68, %v72
  %v74 = vlaneseq
  %v75 = vshrl.u32 %v74, 7
  %v76 = vsub.s32 1, %v75
  %v77 = vrot.slane %v68, %v76
  %v80 = vand.u32 %v67, 4294901760
  %81 = vmatprep.subr.mxu0 %v80
  %v82 = vand.u32 %v66, 4294901760
  %83 = vmatpush1.msra.mxu0 %v82
  %v84 = vand.u32 %v65, 4294901760
  %85 = vmatprep.subr.mxu0 %v84
  %v86 = vand.u32 %v64, 4294901760
  %87 = vmatpush1.msra.mxu0 %v86
  %v88 = vand.u32 %v63, 4294901760
  %89 = vmatprep.subr.mxu0 %v88
  %v90 = vand.u32 %v62, 4294901760
  %91 = vmatpush1.msra.mxu0 %v90
  %v92 = vand.u32 %v61, 4294901760
  %93 = vmatprep.subr.mxu0 %v92
  %v94 = vand.u32 %v60, 4294901760
  %95 = vmatpush1.msra.mxu0 %v94
  %v96 = vand.u32 %v59, 4294901760
  %97 = vmatprep.subr.mxu0 %v96
  %v98 = vand.u32 %v58, 4294901760
  %99 = vmatpush1.msra.mxu0 %v98
  %v100 = vand.u32 %v57, 4294901760
  %101 = vmatprep.subr.mxu0 %v100
  %v102 = vand.u32 %v56, 4294901760
  %103 = vmatpush1.msra.mxu0 %v102
  %v104 = vand.u32 %v55, 4294901760
  %105 = vmatprep.subr.mxu0 %v104
  %v106 = vand.u32 %v54, 4294901760
  %107 = vmatpush1.msra.mxu0 %v106
  %v108 = vand.u32 %v53, 4294901760
  %109 = vmatprep.subr.mxu0 %v108
  %v110 = vand.u32 %v52, 4294901760
  %111 = vmatpush1.msra.mxu0 %v110
  %v112 = vand.u32 %v51, 4294901760
  %113 = vmatprep.subr.mxu0 %v112
  %v114 = vand.u32 %v50, 4294901760
  %115 = vmatpush1.msra.mxu0 %v114
  %v116 = vand.u32 %v49, 4294901760
  %117 = vmatprep.subr.mxu0 %v116
  %v118 = vand.u32 %v48, 4294901760
  %119 = vmatpush1.msra.mxu0 %v118
  %v120 = vand.u32 %v47, 4294901760
  %121 = vmatprep.subr.mxu0 %v120
  %v122 = vand.u32 %v46, 4294901760
  %123 = vmatpush1.msra.mxu0 %v122
  %v124 = vand.u32 %v45, 4294901760
  %125 = vmatprep.subr.mxu0 %v124
  %v126 = vand.u32 %v44, 4294901760
  %127 = vmatpush1.msra.mxu0 %v126
  %v128 = vand.u32 %v43, 4294901760
  %129 = vmatprep.subr.mxu0 %v128
  %v130 = vand.u32 %v42, 4294901760
  %131 = vmatpush1.msra.mxu0 %v130
  %v132 = vand.u32 %v41, 4294901760
  %133 = vmatprep.subr.mxu0 %v132
  %v134 = vand.u32 %v40, 4294901760
  %135 = vmatpush1.msra.mxu0 %v134
  %v136 = vand.u32 %v39, 4294901760
  %137 = vmatprep.subr.mxu0 %v136
  %v138 = vand.u32 %v38, 4294901760
  %139 = vmatpush1.msra.mxu0 %v138
  %v140 = vand.u32 %v37, 4294901760
  %141 = vmatprep.subr.mxu0 %v140
  %v142 = vand.u32 %v36, 4294901760
  %143 = vmatpush1.msra.mxu0 %v142
  %144 = vmatprep.subr.mxu0 0.0
  %145 = vmatpush2.msra.mxu0 0.0
  %146 = vmatprep.subr.mxu0 0.0
  %147 = vmatpush2.msra.mxu0 0.0
  %148 = vmatprep.subr.mxu0 0.0
  %149 = vmatpush2.msra.mxu0 0.0
  %150 = vmatprep.subr.mxu0 0.0
  %151 = vmatpush2.msra.mxu0 0.0
  %152 = vmatprep.subr.mxu0 0.0
  %153 = vmatpush2.msra.mxu0 0.0
  %154 = vmatprep.subr.mxu0 0.0
  %155 = vmatpush2.msra.mxu0 0.0
  %156 = vmatprep.subr.mxu0 0.0
  %157 = vmatpush2.msra.mxu0 0.0
  %158 = vmatprep.subr.mxu0 0.0
  %159 = vmatpush2.msra.mxu0 0.0
  %160 = vmatprep.subr.mxu0 0.0
  %161 = vmatpush2.msra.mxu0 0.0
  %162 = vmatprep.subr.mxu0 0.0
  %163 = vmatpush2.msra.mxu0 0.0
  %164 = vmatprep.subr.mxu0 0.0
  %165 = vmatpush2.msra.mxu0 0.0
  %166 = vmatprep.subr.mxu0 0.0
  %167 = vmatpush2.msra.mxu0 0.0
  %168 = vmatprep.subr.mxu0 0.0
  %169 = vmatpush2.msra.mxu0 0.0
  %170 = vmatprep.subr.mxu0 0.0
  %171 = vmatpush2.msra.mxu0 0.0
  %172 = vmatprep.subr.mxu0 0.0
  %173 = vmatpush2.msra.mxu0 0.0
  %174 = vmatprep.subr.mxu0 0.0
  %175 = vmatpush2.msra.mxu0 0.0
  %176 = vmatprep.mubr.f32.mxu0 0.0
  %v177 = vand.u32 %v20, 4294901760
  %v178 = vsub.f32 %v20, %v177
  %v179 = vand.u32 %v178, 4294901760
  %v180 = vsub.f32 %v178, %v179
  %v181 = vand.u32 %v180, 4294901760
  %182 = vmatmul.mubr.f32.gmra.mxu0 %v181
  %v183 = vpop.f32.mrf.mxu0
  %v184 = vadd.f32 %v73, %v183
  %v185 = vpop.f32.mrf.mxu0
  %v186 = vadd.f32 %v77, %v185
  %187 = vmatprep.mubr.f32.mxu0 0.0
  %v188 = vand.u32 %v21, 4294901760
  %v189 = vsub.f32 %v21, %v188
  %v190 = vand.u32 %v189, 4294901760
  %v191 = vsub.f32 %v189, %v190
  %v192 = vand.u32 %v191, 4294901760
  %193 = vmatmul.mubr.f32.gmra.mxu0 %v192
  %v194 = vpop.f32.mrf.mxu0
  %v195 = vadd.f32 %v73, %v194
  %v196 = vpop.f32.mrf.mxu0
  %v197 = vadd.f32 %v77, %v196
  %198 = vmatprep.mubr.f32.mxu0 0.0
  %v199 = vand.u32 %v22, 4294901760
  %v200 = vsub.f32 %v22, %v199
  %v201 = vand.u32 %v200, 4294901760
  %v202 = vsub.f32 %v200, %v201
  %v203 = vand.u32 %v202, 4294901760
  %204 = vmatmul.mubr.f32.gmra.mxu0 %v203
  %v205 = vpop.f32.mrf.mxu0
  %v206 = vadd.f32 %v73, %v205
  %v207 = vpop.f32.mrf.mxu0
  %v208 = vadd.f32 %v77, %v207
  %209 = vmatprep.mubr.f32.mxu0 0.0
  %v210 = vand.u32 %v23, 4294901760
  %v211 = vsub.f32 %v23, %v210
  %v212 = vand.u32 %v211, 4294901760
  %v213 = vsub.f32 %v211, %v212
  %v214 = vand.u32 %v213, 4294901760
  %215 = vmatmul.mubr.f32.gmra.mxu0 %v214
  %v216 = vpop.f32.mrf.mxu0
  %v217 = vadd.f32 %v73, %v216
  %v218 = vpop.f32.mrf.mxu0
  %v219 = vadd.f32 %v77, %v218
  %220 = vmatprep.mubr.f32.mxu0 0.0
  %v221 = vand.u32 %v24, 4294901760
  %v222 = vsub.f32 %v24, %v221
  %v223 = vand.u32 %v222, 4294901760
  %v224 = vsub.f32 %v222, %v223
  %v225 = vand.u32 %v224, 4294901760
  %226 = vmatmul.mubr.f32.gmra.mxu0 %v225
  %v227 = vpop.f32.mrf.mxu0
  %v228 = vadd.f32 %v73, %v227
  %v229 = vpop.f32.mrf.mxu0
  %v230 = vadd.f32 %v77, %v229
  %231 = vmatprep.mubr.f32.mxu0 0.0
  %v232 = vand.u32 %v25, 4294901760
  %v233 = vsub.f32 %v25, %v232
  %v234 = vand.u32 %v233, 4294901760
  %v235 = vsub.f32 %v233, %v234
  %v236 = vand.u32 %v235, 4294901760
  %237 = vmatmul.mubr.f32.gmra.mxu0 %v236
  %v238 = vpop.f32.mrf.mxu0
  %v239 = vadd.f32 %v73, %v238
  %v240 = vpop.f32.mrf.mxu0
  %v241 = vadd.f32 %v77, %v240
  %242 = vmatprep.mubr.f32.mxu0 0.0
  %v243 = vand.u32 %v26, 4294901760
  %v244 = vsub.f32 %v26, %v243
  %v245 = vand.u32 %v244, 4294901760
  %v246 = vsub.f32 %v244, %v245
  %v247 = vand.u32 %v246, 4294901760
  %248 = vmatmul.mubr.f32.gmra.mxu0 %v247
  %v249 = vpop.f32.mrf.mxu0
  %v250 = vadd.f32 %v73, %v249
  %v251 = vpop.f32.mrf.mxu0
  %v252 = vadd.f32 %v77, %v251
  %253 = vmatprep.mubr.f32.mxu0 0.0
  %v254 = vand.u32 %v27, 4294901760
  %v255 = vsub.f32 %v27, %v254
  %v256 = vand.u32 %v255, 4294901760
  %v257 = vsub.f32 %v255, %v256
  %v258 = vand.u32 %v257, 4294901760
  %259 = vmatmul.mubr.f32.gmra.mxu0 %v258
  %v260 = vpop.f32.mrf.mxu0
  %v261 = vadd.f32 %v73, %v260
  %v262 = vpop.f32.mrf.mxu0
  %v263 = vadd.f32 %v77, %v262
  %264 = vmatprep.mubr.f32.mxu0 0.0
  %v265 = vand.u32 %v28, 4294901760
  %v266 = vsub.f32 %v28, %v265
  %v267 = vand.u32 %v266, 4294901760
  %v268 = vsub.f32 %v266, %v267
  %v269 = vand.u32 %v268, 4294901760
  %270 = vmatmul.mubr.f32.gmra.mxu0 %v269
  %v271 = vpop.f32.mrf.mxu0
  %v272 = vadd.f32 %v73, %v271
  %v273 = vpop.f32.mrf.mxu0
  %v274 = vadd.f32 %v77, %v273
  %275 = vmatprep.mubr.f32.mxu0 0.0
  %v276 = vand.u32 %v29, 4294901760
  %v277 = vsub.f32 %v29, %v276
  %v278 = vand.u32 %v277, 4294901760
  %v279 = vsub.f32 %v277, %v278
  %v280 = vand.u32 %v279, 4294901760
  %281 = vmatmul.mubr.f32.gmra.mxu0 %v280
  %v282 = vpop.f32.mrf.mxu0
  %v283 = vadd.f32 %v73, %v282
  %v284 = vpop.f32.mrf.mxu0
  %v285 = vadd.f32 %v77, %v284
  %286 = vmatprep.mubr.f32.mxu0 0.0
  %v287 = vand.u32 %v30, 4294901760
  %v288 = vsub.f32 %v30, %v287
  %v289 = vand.u32 %v288, 4294901760
  %v290 = vsub.f32 %v288, %v289
  %v291 = vand.u32 %v290, 4294901760
  %292 = vmatmul.mubr.f32.gmra.mxu0 %v291
  %v293 = vpop.f32.mrf.mxu0
  %v294 = vadd.f32 %v73, %v293
  %v295 = vpop.f32.mrf.mxu0
  %v296 = vadd.f32 %v77, %v295
  %297 = vmatprep.mubr.f32.mxu0 0.0
  %v298 = vand.u32 %v31, 4294901760
  %v299 = vsub.f32 %v31, %v298
  %v300 = vand.u32 %v299, 4294901760
  %v301 = vsub.f32 %v299, %v300
  %v302 = vand.u32 %v301, 4294901760
  %303 = vmatmul.mubr.f32.gmra.mxu0 %v302
  %v304 = vpop.f32.mrf.mxu0
  %v305 = vadd.f32 %v73, %v304
  %v306 = vpop.f32.mrf.mxu0
  %v307 = vadd.f32 %v77, %v306
  %308 = vmatprep.mubr.f32.mxu0 0.0
  %v309 = vand.u32 %v32, 4294901760
  %v310 = vsub.f32 %v32, %v309
  %v311 = vand.u32 %v310, 4294901760
  %v312 = vsub.f32 %v310, %v311
  %v313 = vand.u32 %v312, 4294901760
  %314 = vmatmul.mubr.f32.gmra.mxu0 %v313
  %v315 = vpop.f32.mrf.mxu0
  %v316 = vadd.f32 %v73, %v315
  %v317 = vpop.f32.mrf.mxu0
  %v318 = vadd.f32 %v77, %v317
  %319 = vmatprep.mubr.f32.mxu0 0.0
  %v320 = vand.u32 %v33, 4294901760
  %v321 = vsub.f32 %v33, %v320
  %v322 = vand.u32 %v321, 4294901760
  %v323 = vsub.f32 %v321, %v322
  %v324 = vand.u32 %v323, 4294901760
  %325 = vmatmul.mubr.f32.gmra.mxu0 %v324
  %v326 = vpop.f32.mrf.mxu0
  %v327 = vadd.f32 %v73, %v326
  %v328 = vpop.f32.mrf.mxu0
  %v329 = vadd.f32 %v77, %v328
  %330 = vmatprep.mubr.f32.mxu0 0.0
  %v331 = vand.u32 %v34, 4294901760
  %v332 = vsub.f32 %v34, %v331
  %v333 = vand.u32 %v332, 4294901760
  %v334 = vsub.f32 %v332, %v333
  %v335 = vand.u32 %v334, 4294901760
  %336 = vmatmul.mubr.f32.gmra.mxu0 %v335
  %v337 = vpop.f32.mrf.mxu0
  %v338 = vadd.f32 %v73, %v337
  %v339 = vpop.f32.mrf.mxu0
  %v340 = vadd.f32 %v77, %v339
  %341 = vmatprep.mubr.f32.mxu0 0.0
  %v342 = vand.u32 %v35, 4294901760
  %v343 = vsub.f32 %v35, %v342
  %v344 = vand.u32 %v343, 4294901760
  %v345 = vsub.f32 %v343, %v344
  %v346 = vand.u32 %v345, 4294901760
  %347 = vmatmul.mubr.f32.gmra.mxu0 %v346
  %v348 = vpop.f32.mrf.mxu0
  %v349 = vadd.f32 %v73, %v348
  %v350 = vpop.f32.mrf.mxu0
  %v351 = vadd.f32 %v77, %v350
  %352 = vdwg.mxu0
  %v353 = vand.u32 %v67, 4294901760
  %v354 = vsub.f32 %v67, %v353
  %v355 = vand.u32 %v354, 4294901760
  %v356 = vsub.f32 %v354, %v355
  %v357 = vand.u32 %v356, 4294901760
  %358 = vmatprep.subr.mxu0 %v357
  %v359 = vand.u32 %v66, 4294901760
  %v360 = vsub.f32 %v66, %v359
  %v361 = vand.u32 %v360, 4294901760
  %v362 = vsub.f32 %v360, %v361
  %v363 = vand.u32 %v362, 4294901760
  %364 = vmatpush1.msra.mxu0 %v363
  %v365 = vand.u32 %v65, 4294901760
  %v366 = vsub.f32 %v65, %v365
  %v367 = vand.u32 %v366, 4294901760
  %v368 = vsub.f32 %v366, %v367
  %v369 = vand.u32 %v368, 4294901760
  %370 = vmatprep.subr.mxu0 %v369
  %v371 = vand.u32 %v64, 4294901760
  %v372 = vsub.f32 %v64, %v371
  %v373 = vand.u32 %v372, 4294901760
  %v374 = vsub.f32 %v372, %v373
  %v375 = vand.u32 %v374, 4294901760
  %376 = vmatpush1.msra.mxu0 %v375
  %v377 = vand.u32 %v63, 4294901760
  %v378 = vsub.f32 %v63, %v377
  %v379 = vand.u32 %v378, 4294901760
  %v380 = vsub.f32 %v378, %v379
  %v381 = vand.u32 %v380, 4294901760
  %382 = vmatprep.subr.mxu0 %v381
  %v383 = vand.u32 %v62, 4294901760
  %v384 = vsub.f32 %v62, %v383
  %v385 = vand.u32 %v384, 4294901760
  %v386 = vsub.f32 %v384, %v385
  %v387 = vand.u32 %v386, 4294901760
  %388 = vmatpush1.msra.mxu0 %v387
  %v389 = vand.u32 %v61, 4294901760
  %v390 = vsub.f32 %v61, %v389
  %v391 = vand.u32 %v390, 4294901760
  %v392 = vsub.f32 %v390, %v391
  %v393 = vand.u32 %v392, 4294901760
  %394 = vmatprep.subr.mxu0 %v393
  %v395 = vand.u32 %v60, 4294901760
  %v396 = vsub.f32 %v60, %v395
  %v397 = vand.u32 %v396, 4294901760
  %v398 = vsub.f32 %v396, %v397
  %v399 = vand.u32 %v398, 4294901760
  %400 = vmatpush1.msra.mxu0 %v399
  %v401 = vand.u32 %v59, 4294901760
  %v402 = vsub.f32 %v59, %v401
  %v403 = vand.u32 %v402, 4294901760
  %v404 = vsub.f32 %v402, %v403
  %v405 = vand.u32 %v404, 4294901760
  %406 = vmatprep.subr.mxu0 %v405
  %v407 = vand.u32 %v58, 4294901760
  %v408 = vsub.f32 %v58, %v407
  %v409 = vand.u32 %v408, 4294901760
  %v410 = vsub.f32 %v408, %v409
  %v411 = vand.u32 %v410, 4294901760
  %412 = vmatpush1.msra.mxu0 %v411
  %v413 = vand.u32 %v57, 4294901760
  %v414 = vsub.f32 %v57, %v413
  %v415 = vand.u32 %v414, 4294901760
  %v416 = vsub.f32 %v414, %v415
  %v417 = vand.u32 %v416, 4294901760
  %418 = vmatprep.subr.mxu0 %v417
  %v419 = vand.u32 %v56, 4294901760
  %v420 = vsub.f32 %v56, %v419
  %v421 = vand.u32 %v420, 4294901760
  %v422 = vsub.f32 %v420, %v421
  %v423 = vand.u32 %v422, 4294901760
  %424 = vmatpush1.msra.mxu0 %v423
  %v425 = vand.u32 %v55, 4294901760
  %v426 = vsub.f32 %v55, %v425
  %v427 = vand.u32 %v426, 4294901760
  %v428 = vsub.f32 %v426, %v427
  %v429 = vand.u32 %v428, 4294901760
  %430 = vmatprep.subr.mxu0 %v429
  %v431 = vand.u32 %v54, 4294901760
  %v432 = vsub.f32 %v54, %v431
  %v433 = vand.u32 %v432, 4294901760
  %v434 = vsub.f32 %v432, %v433
  %v435 = vand.u32 %v434, 4294901760
  %436 = vmatpush1.msra.mxu0 %v435
  %v437 = vand.u32 %v53, 4294901760
  %v438 = vsub.f32 %v53, %v437
  %v439 = vand.u32 %v438, 4294901760
  %v440 = vsub.f32 %v438, %v439
  %v441 = vand.u32 %v440, 4294901760
  %442 = vmatprep.subr.mxu0 %v441
  %v443 = vand.u32 %v52, 4294901760
  %v444 = vsub.f32 %v52, %v443
  %v445 = vand.u32 %v444, 4294901760
  %v446 = vsub.f32 %v444, %v445
  %v447 = vand.u32 %v446, 4294901760
  %448 = vmatpush1.msra.mxu0 %v447
  %v449 = vand.u32 %v51, 4294901760
  %v450 = vsub.f32 %v51, %v449
  %v451 = vand.u32 %v450, 4294901760
  %v452 = vsub.f32 %v450, %v451
  %v453 = vand.u32 %v452, 4294901760
  %454 = vmatprep.subr.mxu0 %v453
  %v455 = vand.u32 %v50, 4294901760
  %v456 = vsub.f32 %v50, %v455
  %v457 = vand.u32 %v456, 4294901760
  %v458 = vsub.f32 %v456, %v457
  %v459 = vand.u32 %v458, 4294901760
  %460 = vmatpush1.msra.mxu0 %v459
  %v461 = vand.u32 %v49, 4294901760
  %v462 = vsub.f32 %v49, %v461
  %v463 = vand.u32 %v462, 4294901760
  %v464 = vsub.f32 %v462, %v463
  %v465 = vand.u32 %v464, 4294901760
  %466 = vmatprep.subr.mxu0 %v465
  %v467 = vand.u32 %v48, 4294901760
  %v468 = vsub.f32 %v48, %v467
  %v469 = vand.u32 %v468, 4294901760
  %v470 = vsub.f32 %v468, %v469
  %v471 = vand.u32 %v470, 4294901760
  %472 = vmatpush1.msra.mxu0 %v471
  %v473 = vand.u32 %v47, 4294901760
  %v474 = vsub.f32 %v47, %v473
  %v475 = vand.u32 %v474, 4294901760
  %v476 = vsub.f32 %v474, %v475
  %v477 = vand.u32 %v476, 4294901760
  %478 = vmatprep.subr.mxu0 %v477
  %v479 = vand.u32 %v46, 4294901760
  %v480 = vsub.f32 %v46, %v479
  %v481 = vand.u32 %v480, 4294901760
  %v482 = vsub.f32 %v480, %v481
  %v483 = vand.u32 %v482, 4294901760
  %484 = vmatpush1.msra.mxu0 %v483
  %v485 = vand.u32 %v45, 4294901760
  %v486 = vsub.f32 %v45, %v485
  %v487 = vand.u32 %v486, 4294901760
  %v488 = vsub.f32 %v486, %v487
  %v489 = vand.u32 %v488, 4294901760
  %490 = vmatprep.subr.mxu0 %v489
  %v491 = vand.u32 %v44, 4294901760
  %v492 = vsub.f32 %v44, %v491
  %v493 = vand.u32 %v492, 4294901760
  %v494 = vsub.f32 %v492, %v493
  %v495 = vand.u32 %v494, 4294901760
  %496 = vmatpush1.msra.mxu0 %v495
  %v497 = vand.u32 %v43, 4294901760
  %v498 = vsub.f32 %v43, %v497
  %v499 = vand.u32 %v498, 4294901760
  %v500 = vsub.f32 %v498, %v499
  %v501 = vand.u32 %v500, 4294901760
  %502 = vmatprep.subr.mxu0 %v501
  %v503 = vand.u32 %v42, 4294901760
  %v504 = vsub.f32 %v42, %v503
  %v505 = vand.u32 %v504, 4294901760
  %v506 = vsub.f32 %v504, %v505
  %v507 = vand.u32 %v506, 4294901760
  %508 = vmatpush1.msra.mxu0 %v507
  %v509 = vand.u32 %v41, 4294901760
  %v510 = vsub.f32 %v41, %v509
  %v511 = vand.u32 %v510, 4294901760
  %v512 = vsub.f32 %v510, %v511
  %v513 = vand.u32 %v512, 4294901760
  %514 = vmatprep.subr.mxu0 %v513
  %v515 = vand.u32 %v40, 4294901760
  %v516 = vsub.f32 %v40, %v515
  %v517 = vand.u32 %v516, 4294901760
  %v518 = vsub.f32 %v516, %v517
  %v519 = vand.u32 %v518, 4294901760
  %520 = vmatpush1.msra.mxu0 %v519
  %v521 = vand.u32 %v39, 4294901760
  %v522 = vsub.f32 %v39, %v521
  %v523 = vand.u32 %v522, 4294901760
  %v524 = vsub.f32 %v522, %v523
  %v525 = vand.u32 %v524, 4294901760
  %526 = vmatprep.subr.mxu0 %v525
  %v527 = vand.u32 %v38, 4294901760
  %v528 = vsub.f32 %v38, %v527
  %v529 = vand.u32 %v528, 4294901760
  %v530 = vsub.f32 %v528, %v529
  %v531 = vand.u32 %v530, 4294901760
  %532 = vmatpush1.msra.mxu0 %v531
  %v533 = vand.u32 %v37, 4294901760
  %v534 = vsub.f32 %v37, %v533
  %v535 = vand.u32 %v534, 4294901760
  %v536 = vsub.f32 %v534, %v535
  %v537 = vand.u32 %v536, 4294901760
  %538 = vmatprep.subr.mxu0 %v537
  %v539 = vand.u32 %v36, 4294901760
  %v540 = vsub.f32 %v36, %v539
  %v541 = vand.u32 %v540, 4294901760
  %v542 = vsub.f32 %v540, %v541
  %v543 = vand.u32 %v542, 4294901760
  %544 = vmatpush1.msra.mxu0 %v543
  %545 = vmatprep.subr.mxu0 0.0
  %546 = vmatpush2.msra.mxu0 0.0
  %547 = vmatprep.subr.mxu0 0.0
  %548 = vmatpush2.msra.mxu0 0.0
  %549 = vmatprep.subr.mxu0 0.0
  %550 = vmatpush2.msra.mxu0 0.0
  %551 = vmatprep.subr.mxu0 0.0
  %552 = vmatpush2.msra.mxu0 0.0
  %553 = vmatprep.subr.mxu0 0.0
  %554 = vmatpush2.msra.mxu0 0.0
  %555 = vmatprep.subr.mxu0 0.0
  %556 = vmatpush2.msra.mxu0 0.0
  %557 = vmatprep.subr.mxu0 0.0
  %558 = vmatpush2.msra.mxu0 0.0
  %559 = vmatprep.subr.mxu0 0.0
  %560 = vmatpush2.msra.mxu0 0.0
  %561 = vmatprep.subr.mxu0 0.0
  %562 = vmatpush2.msra.mxu0 0.0
  %563 = vmatprep.subr.mxu0 0.0
  %564 = vmatpush2.msra.mxu0 0.0
  %565 = vmatprep.subr.mxu0 0.0
  %566 = vmatpush2.msra.mxu0 0.0
  %567 = vmatprep.subr.mxu0 0.0
  %568 = vmatpush2.msra.mxu0 0.0
  %569 = vmatprep.subr.mxu0 0.0
  %570 = vmatpush2.msra.mxu0 0.0
  %571 = vmatprep.subr.mxu0 0.0
  %572 = vmatpush2.msra.mxu0 0.0
  %573 = vmatprep.subr.mxu0 0.0
  %574 = vmatpush2.msra.mxu0 0.0
  %575 = vmatprep.subr.mxu0 0.0
  %576 = vmatpush2.msra.mxu0 0.0
  %577 = vmatprep.mubr.f32.mxu0 0.0
  %v578 = vand.u32 %v20, 4294901760
  %579 = vmatmul.mubr.f32.gmra.mxu0 %v578
  %v580 = vpop.f32.mrf.mxu0
  %v581 = vadd.f32 %v184, %v580
  %v582 = vpop.f32.mrf.mxu0
  %v583 = vadd.f32 %v186, %v582
  %584 = vmatprep.mubr.f32.mxu0 0.0
  %v585 = vand.u32 %v21, 4294901760
  %586 = vmatmul.mubr.f32.gmra.mxu0 %v585
  %v587 = vpop.f32.mrf.mxu0
  %v588 = vadd.f32 %v195, %v587
  %v589 = vpop.f32.mrf.mxu0
  %v590 = vadd.f32 %v197, %v589
  %591 = vmatprep.mubr.f32.mxu0 0.0
  %v592 = vand.u32 %v22, 4294901760
  %593 = vmatmul.mubr.f32.gmra.mxu0 %v592
  %v594 = vpop.f32.mrf.mxu0
  %v595 = vadd.f32 %v206, %v594
  %v596 = vpop.f32.mrf.mxu0
  %v597 = vadd.f32 %v208, %v596
  %598 = vmatprep.mubr.f32.mxu0 0.0
  %v599 = vand.u32 %v23, 4294901760
  %600 = vmatmul.mubr.f32.gmra.mxu0 %v599
  %v601 = vpop.f32.mrf.mxu0
  %v602 = vadd.f32 %v217, %v601
  %v603 = vpop.f32.mrf.mxu0
  %v604 = vadd.f32 %v219, %v603
  %605 = vmatprep.mubr.f32.mxu0 0.0
  %v606 = vand.u32 %v24, 4294901760
  %607 = vmatmul.mubr.f32.gmra.mxu0 %v606
  %v608 = vpop.f32.mrf.mxu0
  %v609 = vadd.f32 %v228, %v608
  %v610 = vpop.f32.mrf.mxu0
  %v611 = vadd.f32 %v230, %v610
  %612 = vmatprep.mubr.f32.mxu0 0.0
  %v613 = vand.u32 %v25, 4294901760
  %614 = vmatmul.mubr.f32.gmra.mxu0 %v613
  %v615 = vpop.f32.mrf.mxu0
  %v616 = vadd.f32 %v239, %v615
  %v617 = vpop.f32.mrf.mxu0
  %v618 = vadd.f32 %v241, %v617
  %619 = vmatprep.mubr.f32.mxu0 0.0
  %v620 = vand.u32 %v26, 4294901760
  %621 = vmatmul.mubr.f32.gmra.mxu0 %v620
  %v622 = vpop.f32.mrf.mxu0
  %v623 = vadd.f32 %v250, %v622
  %v624 = vpop.f32.mrf.mxu0
  %v625 = vadd.f32 %v252, %v624
  %626 = vmatprep.mubr.f32.mxu0 0.0
  %v627 = vand.u32 %v27, 4294901760
  %628 = vmatmul.mubr.f32.gmra.mxu0 %v627
  %v629 = vpop.f32.mrf.mxu0
  %v630 = vadd.f32 %v261, %v629
  %v631 = vpop.f32.mrf.mxu0
  %v632 = vadd.f32 %v263, %v631
  %633 = vmatprep.mubr.f32.mxu0 0.0
  %v634 = vand.u32 %v28, 4294901760
  %635 = vmatmul.mubr.f32.gmra.mxu0 %v634
  %v636 = vpop.f32.mrf.mxu0
  %v637 = vadd.f32 %v272, %v636
  %v638 = vpop.f32.mrf.mxu0
  %v639 = vadd.f32 %v274, %v638
  %640 = vmatprep.mubr.f32.mxu0 0.0
  %v641 = vand.u32 %v29, 4294901760
  %642 = vmatmul.mubr.f32.gmra.mxu0 %v641
  %v643 = vpop.f32.mrf.mxu0
  %v644 = vadd.f32 %v283, %v643
  %v645 = vpop.f32.mrf.mxu0
  %v646 = vadd.f32 %v285, %v645
  %647 = vmatprep.mubr.f32.mxu0 0.0
  %v648 = vand.u32 %v30, 4294901760
  %649 = vmatmul.mubr.f32.gmra.mxu0 %v648
  %v650 = vpop.f32.mrf.mxu0
  %v651 = vadd.f32 %v294, %v650
  %v652 = vpop.f32.mrf.mxu0
  %v653 = vadd.f32 %v296, %v652
  %654 = vmatprep.mubr.f32.mxu0 0.0
  %v655 = vand.u32 %v31, 4294901760
  %656 = vmatmul.mubr.f32.gmra.mxu0 %v655
  %v657 = vpop.f32.mrf.mxu0
  %v658 = vadd.f32 %v305, %v657
  %v659 = vpop.f32.mrf.mxu0
  %v660 = vadd.f32 %v307, %v659
  %661 = vmatprep.mubr.f32.mxu0 0.0
  %v662 = vand.u32 %v32, 4294901760
  %663 = vmatmul.mubr.f32.gmra.mxu0 %v662
  %v664 = vpop.f32.mrf.mxu0
  %v665 = vadd.f32 %v316, %v664
  %v666 = vpop.f32.mrf.mxu0
  %v667 = vadd.f32 %v318, %v666
  %668 = vmatprep.mubr.f32.mxu0 0.0
  %v669 = vand.u32 %v33, 4294901760
  %670 = vmatmul.mubr.f32.gmra.mxu0 %v669
  %v671 = vpop.f32.mrf.mxu0
  %v672 = vadd.f32 %v327, %v671
  %v673 = vpop.f32.mrf.mxu0
  %v674 = vadd.f32 %v329, %v673
  %675 = vmatprep.mubr.f32.mxu0 0.0
  %v676 = vand.u32 %v34, 4294901760
  %677 = vmatmul.mubr.f32.gmra.mxu0 %v676
  %v678 = vpop.f32.mrf.mxu0
  %v679 = vadd.f32 %v338, %v678
  %v680 = vpop.f32.mrf.mxu0
  %v681 = vadd.f32 %v340, %v680
  %682 = vmatprep.mubr.f32.mxu0 0.0
  %v683 = vand.u32 %v35, 4294901760
  %684 = vmatmul.mubr.f32.gmra.mxu0 %v683
  %v685 = vpop.f32.mrf.mxu0
  %v686 = vadd.f32 %v349, %v685
  %v687 = vpop.f32.mrf.mxu0
  %v688 = vadd.f32 %v351, %v687
  %689 = vdwg.mxu0
  %v690 = vand.u32 %v67, 4294901760
  %v691 = vsub.f32 %v67, %v690
  %692 = vmatprep.subr.mxu0 %v691
  %v693 = vand.u32 %v66, 4294901760
  %v694 = vsub.f32 %v66, %v693
  %695 = vmatpush1.msra.mxu0 %v694
  %v696 = vand.u32 %v65, 4294901760
  %v697 = vsub.f32 %v65, %v696
  %698 = vmatprep.subr.mxu0 %v697
  %v699 = vand.u32 %v64, 4294901760
  %v700 = vsub.f32 %v64, %v699
  %701 = vmatpush1.msra.mxu0 %v700
  %v702 = vand.u32 %v63, 4294901760
  %v703 = vsub.f32 %v63, %v702
  %704 = vmatprep.subr.mxu0 %v703
  %v705 = vand.u32 %v62, 4294901760
  %v706 = vsub.f32 %v62, %v705
  %707 = vmatpush1.msra.mxu0 %v706
  %v708 = vand.u32 %v61, 4294901760
  %v709 = vsub.f32 %v61, %v708
  %710 = vmatprep.subr.mxu0 %v709
  %v711 = vand.u32 %v60, 4294901760
  %v712 = vsub.f32 %v60, %v711
  %713 = vmatpush1.msra.mxu0 %v712
  %v714 = vand.u32 %v59, 4294901760
  %v715 = vsub.f32 %v59, %v714
  %716 = vmatprep.subr.mxu0 %v715
  %v717 = vand.u32 %v58, 4294901760
  %v718 = vsub.f32 %v58, %v717
  %719 = vmatpush1.msra.mxu0 %v718
  %v720 = vand.u32 %v57, 4294901760
  %v721 = vsub.f32 %v57, %v720
  %722 = vmatprep.subr.mxu0 %v721
  %v723 = vand.u32 %v56, 4294901760
  %v724 = vsub.f32 %v56, %v723
  %725 = vmatpush1.msra.mxu0 %v724
  %v726 = vand.u32 %v55, 4294901760
  %v727 = vsub.f32 %v55, %v726
  %728 = vmatprep.subr.mxu0 %v727
  %v729 = vand.u32 %v54, 4294901760
  %v730 = vsub.f32 %v54, %v729
  %731 = vmatpush1.msra.mxu0 %v730
  %v732 = vand.u32 %v53, 4294901760
  %v733 = vsub.f32 %v53, %v732
  %734 = vmatprep.subr.mxu0 %v733
  %v735 = vand.u32 %v52, 4294901760
  %v736 = vsub.f32 %v52, %v735
  %737 = vmatpush1.msra.mxu0 %v736
  %v738 = vand.u32 %v51, 4294901760
  %v739 = vsub.f32 %v51, %v738
  %740 = vmatprep.subr.mxu0 %v739
  %v741 = vand.u32 %v50, 4294901760
  %v742 = vsub.f32 %v50, %v741
  %743 = vmatpush1.msra.mxu0 %v742
  %v744 = vand.u32 %v49, 4294901760
  %v745 = vsub.f32 %v49, %v744
  %746 = vmatprep.subr.mxu0 %v745
  %v747 = vand.u32 %v48, 4294901760
  %v748 = vsub.f32 %v48, %v747
  %749 = vmatpush1.msra.mxu0 %v748
  %v750 = vand.u32 %v47, 4294901760
  %v751 = vsub.f32 %v47, %v750
  %752 = vmatprep.subr.mxu0 %v751
  %v753 = vand.u32 %v46, 4294901760
  %v754 = vsub.f32 %v46, %v753
  %755 = vmatpush1.msra.mxu0 %v754
  %v756 = vand.u32 %v45, 4294901760
  %v757 = vsub.f32 %v45, %v756
  %758 = vmatprep.subr.mxu0 %v757
  %v759 = vand.u32 %v44, 4294901760
  %v760 = vsub.f32 %v44, %v759
  %761 = vmatpush1.msra.mxu0 %v760
  %v762 = vand.u32 %v43, 4294901760
  %v763 = vsub.f32 %v43, %v762
  %764 = vmatprep.subr.mxu0 %v763
  %v765 = vand.u32 %v42, 4294901760
  %v766 = vsub.f32 %v42, %v765
  %767 = vmatpush1.msra.mxu0 %v766
  %v768 = vand.u32 %v41, 4294901760
  %v769 = vsub.f32 %v41, %v768
  %770 = vmatprep.subr.mxu0 %v769
  %v771 = vand.u32 %v40, 4294901760
  %v772 = vsub.f32 %v40, %v771
  %773 = vmatpush1.msra.mxu0 %v772
  %v774 = vand.u32 %v39, 4294901760
  %v775 = vsub.f32 %v39, %v774
  %776 = vmatprep.subr.mxu0 %v775
  %v777 = vand.u32 %v38, 4294901760
  %v778 = vsub.f32 %v38, %v777
  %779 = vmatpush1.msra.mxu0 %v778
  %v780 = vand.u32 %v37, 4294901760
  %v781 = vsub.f32 %v37, %v780
  %782 = vmatprep.subr.mxu0 %v781
  %v783 = vand.u32 %v36, 4294901760
  %v784 = vsub.f32 %v36, %v783
  %785 = vmatpush1.msra.mxu0 %v784
  %786 = vmatprep.subr.mxu0 0.0
  %787 = vmatpush2.msra.mxu0 0.0
  %788 = vmatprep.subr.mxu0 0.0
  %789 = vmatpush2.msra.mxu0 0.0
  %790 = vmatprep.subr.mxu0 0.0
  %791 = vmatpush2.msra.mxu0 0.0
  %792 = vmatprep.subr.mxu0 0.0
  %793 = vmatpush2.msra.mxu0 0.0
  %794 = vmatprep.subr.mxu0 0.0
  %795 = vmatpush2.msra.mxu0 0.0
  %796 = vmatprep.subr.mxu0 0.0
  %797 = vmatpush2.msra.mxu0 0.0
  %798 = vmatprep.subr.mxu0 0.0
  %799 = vmatpush2.msra.mxu0 0.0
  %800 = vmatprep.subr.mxu0 0.0
  %801 = vmatpush2.msra.mxu0 0.0
  %802 = vmatprep.subr.mxu0 0.0
  %803 = vmatpush2.msra.mxu0 0.0
  %804 = vmatprep.subr.mxu0 0.0
  %805 = vmatpush2.msra.mxu0 0.0
  %806 = vmatprep.subr.mxu0 0.0
  %807 = vmatpush2.msra.mxu0 0.0
  %808 = vmatprep.subr.mxu0 0.0
  %809 = vmatpush2.msra.mxu0 0.0
  %810 = vmatprep.subr.mxu0 0.0
  %811 = vmatpush2.msra.mxu0 0.0
  %812 = vmatprep.subr.mxu0 0.0
  %813 = vmatpush2.msra.mxu0 0.0
  %814 = vmatprep.subr.mxu0 0.0
  %815 = vmatpush2.msra.mxu0 0.0
  %816 = vmatprep.subr.mxu0 0.0
  %817 = vmatpush2.msra.mxu0 0.0
  %818 = vmatprep.mubr.f32.mxu0 0.0
  %v819 = vand.u32 %v20, 4294901760
  %v820 = vsub.f32 %v20, %v819
  %821 = vmatmul.mubr.f32.gmra.mxu0 %v820
  %v822 = vpop.f32.mrf.mxu0
  %v823 = vadd.f32 %v581, %v822
  %v824 = vpop.f32.mrf.mxu0
  %v825 = vadd.f32 %v583, %v824
  %826 = vmatprep.mubr.f32.mxu0 0.0
  %v827 = vand.u32 %v21, 4294901760
  %v828 = vsub.f32 %v21, %v827
  %829 = vmatmul.mubr.f32.gmra.mxu0 %v828
  %v830 = vpop.f32.mrf.mxu0
  %v831 = vadd.f32 %v588, %v830
  %v832 = vpop.f32.mrf.mxu0
  %v833 = vadd.f32 %v590, %v832
  %834 = vmatprep.mubr.f32.mxu0 0.0
  %v835 = vand.u32 %v22, 4294901760
  %v836 = vsub.f32 %v22, %v835
  %837 = vmatmul.mubr.f32.gmra.mxu0 %v836
  %v838 = vpop.f32.mrf.mxu0
  %v839 = vadd.f32 %v595, %v838
  %v840 = vpop.f32.mrf.mxu0
  %v841 = vadd.f32 %v597, %v840
  %842 = vmatprep.mubr.f32.mxu0 0.0
  %v843 = vand.u32 %v23, 4294901760
  %v844 = vsub.f32 %v23, %v843
  %845 = vmatmul.mubr.f32.gmra.mxu0 %v844
  %v846 = vpop.f32.mrf.mxu0
  %v847 = vadd.f32 %v602, %v846
  %v848 = vpop.f32.mrf.mxu0
  %v849 = vadd.f32 %v604, %v848
  %850 = vmatprep.mubr.f32.mxu0 0.0
  %v851 = vand.u32 %v24, 4294901760
  %v852 = vsub.f32 %v24, %v851
  %853 = vmatmul.mubr.f32.gmra.mxu0 %v852
  %v854 = vpop.f32.mrf.mxu0
  %v855 = vadd.f32 %v609, %v854
  %v856 = vpop.f32.mrf.mxu0
  %v857 = vadd.f32 %v611, %v856
  %858 = vmatprep.mubr.f32.mxu0 0.0
  %v859 = vand.u32 %v25, 4294901760
  %v860 = vsub.f32 %v25, %v859
  %861 = vmatmul.mubr.f32.gmra.mxu0 %v860
  %v862 = vpop.f32.mrf.mxu0
  %v863 = vadd.f32 %v616, %v862
  %v864 = vpop.f32.mrf.mxu0
  %v865 = vadd.f32 %v618, %v864
  %866 = vmatprep.mubr.f32.mxu0 0.0
  %v867 = vand.u32 %v26, 4294901760
  %v868 = vsub.f32 %v26, %v867
  %869 = vmatmul.mubr.f32.gmra.mxu0 %v868
  %v870 = vpop.f32.mrf.mxu0
  %v871 = vadd.f32 %v623, %v870
  %v872 = vpop.f32.mrf.mxu0
  %v873 = vadd.f32 %v625, %v872
  %874 = vmatprep.mubr.f32.mxu0 0.0
  %v875 = vand.u32 %v27, 4294901760
  %v876 = vsub.f32 %v27, %v875
  %877 = vmatmul.mubr.f32.gmra.mxu0 %v876
  %v878 = vpop.f32.mrf.mxu0
  %v879 = vadd.f32 %v630, %v878
  %v880 = vpop.f32.mrf.mxu0
  %v881 = vadd.f32 %v632, %v880
  %882 = vmatprep.mubr.f32.mxu0 0.0
  %v883 = vand.u32 %v28, 4294901760
  %v884 = vsub.f32 %v28, %v883
  %885 = vmatmul.mubr.f32.gmra.mxu0 %v884
  %v886 = vpop.f32.mrf.mxu0
  %v887 = vadd.f32 %v637, %v886
  %v888 = vpop.f32.mrf.mxu0
  %v889 = vadd.f32 %v639, %v888
  %890 = vmatprep.mubr.f32.mxu0 0.0
  %v891 = vand.u32 %v29, 4294901760
  %v892 = vsub.f32 %v29, %v891
  %893 = vmatmul.mubr.f32.gmra.mxu0 %v892
  %v894 = vpop.f32.mrf.mxu0
  %v895 = vadd.f32 %v644, %v894
  %v896 = vpop.f32.mrf.mxu0
  %v897 = vadd.f32 %v646, %v896
  %898 = vmatprep.mubr.f32.mxu0 0.0
  %v899 = vand.u32 %v30, 4294901760
  %v900 = vsub.f32 %v30, %v899
  %901 = vmatmul.mubr.f32.gmra.mxu0 %v900
  %v902 = vpop.f32.mrf.mxu0
  %v903 = vadd.f32 %v651, %v902
  %v904 = vpop.f32.mrf.mxu0
  %v905 = vadd.f32 %v653, %v904
  %906 = vmatprep.mubr.f32.mxu0 0.0
  %v907 = vand.u32 %v31, 4294901760
  %v908 = vsub.f32 %v31, %v907
  %909 = vmatmul.mubr.f32.gmra.mxu0 %v908
  %v910 = vpop.f32.mrf.mxu0
  %v911 = vadd.f32 %v658, %v910
  %v912 = vpop.f32.mrf.mxu0
  %v913 = vadd.f32 %v660, %v912
  %914 = vmatprep.mubr.f32.mxu0 0.0
  %v915 = vand.u32 %v32, 4294901760
  %v916 = vsub.f32 %v32, %v915
  %917 = vmatmul.mubr.f32.gmra.mxu0 %v916
  %v918 = vpop.f32.mrf.mxu0
  %v919 = vadd.f32 %v665, %v918
  %v920 = vpop.f32.mrf.mxu0
  %v921 = vadd.f32 %v667, %v920
  %922 = vmatprep.mubr.f32.mxu0 0.0
  %v923 = vand.u32 %v33, 4294901760
  %v924 = vsub.f32 %v33, %v923
  %925 = vmatmul.mubr.f32.gmra.mxu0 %v924
  %v926 = vpop.f32.mrf.mxu0
  %v927 = vadd.f32 %v672, %v926
  %v928 = vpop.f32.mrf.mxu0
  %v929 = vadd.f32 %v674, %v928
  %930 = vmatprep.mubr.f32.mxu0 0.0
  %v931 = vand.u32 %v34, 4294901760
  %v932 = vsub.f32 %v34, %v931
  %933 = vmatmul.mubr.f32.gmra.mxu0 %v932
  %v934 = vpop.f32.mrf.mxu0
  %v935 = vadd.f32 %v679, %v934
  %v936 = vpop.f32.mrf.mxu0
  %v937 = vadd.f32 %v681, %v936
  %938 = vmatprep.mubr.f32.mxu0 0.0
  %v939 = vand.u32 %v35, 4294901760
  %v940 = vsub.f32 %v35, %v939
  %941 = vmatmul.mubr.f32.gmra.mxu0 %v940
  %v942 = vpop.f32.mrf.mxu0
  %v943 = vadd.f32 %v686, %v942
  %v944 = vpop.f32.mrf.mxu0
  %v945 = vadd.f32 %v688, %v944
  %946 = vdwg.mxu0
  %v947 = vand.u32 %v67, 4294901760
  %948 = vmatprep.subr.mxu0 %v947
  %v949 = vand.u32 %v66, 4294901760
  %950 = vmatpush1.msra.mxu0 %v949
  %v951 = vand.u32 %v65, 4294901760
  %952 = vmatprep.subr.mxu0 %v951
  %v953 = vand.u32 %v64, 4294901760
  %954 = vmatpush1.msra.mxu0 %v953
  %v955 = vand.u32 %v63, 4294901760
  %956 = vmatprep.subr.mxu0 %v955
  %v957 = vand.u32 %v62, 4294901760
  %958 = vmatpush1.msra.mxu0 %v957
  %v959 = vand.u32 %v61, 4294901760
  %960 = vmatprep.subr.mxu0 %v959
  %v961 = vand.u32 %v60, 4294901760
  %962 = vmatpush1.msra.mxu0 %v961
  %v963 = vand.u32 %v59, 4294901760
  %964 = vmatprep.subr.mxu0 %v963
  %v965 = vand.u32 %v58, 4294901760
  %966 = vmatpush1.msra.mxu0 %v965
  %v967 = vand.u32 %v57, 4294901760
  %968 = vmatprep.subr.mxu0 %v967
  %v969 = vand.u32 %v56, 4294901760
  %970 = vmatpush1.msra.mxu0 %v969
  %v971 = vand.u32 %v55, 4294901760
  %972 = vmatprep.subr.mxu0 %v971
  %v973 = vand.u32 %v54, 4294901760
  %974 = vmatpush1.msra.mxu0 %v973
  %v975 = vand.u32 %v53, 4294901760
  %976 = vmatprep.subr.mxu0 %v975
  %v977 = vand.u32 %v52, 4294901760
  %978 = vmatpush1.msra.mxu0 %v977
  %v979 = vand.u32 %v51, 4294901760
  %980 = vmatprep.subr.mxu0 %v979
  %v981 = vand.u32 %v50, 4294901760
  %982 = vmatpush1.msra.mxu0 %v981
  %v983 = vand.u32 %v49, 4294901760
  %984 = vmatprep.subr.mxu0 %v983
  %v985 = vand.u32 %v48, 4294901760
  %986 = vmatpush1.msra.mxu0 %v985
  %v987 = vand.u32 %v47, 4294901760
  %988 = vmatprep.subr.mxu0 %v987
  %v989 = vand.u32 %v46, 4294901760
  %990 = vmatpush1.msra.mxu0 %v989
  %v991 = vand.u32 %v45, 4294901760
  %992 = vmatprep.subr.mxu0 %v991
  %v993 = vand.u32 %v44, 4294901760
  %994 = vmatpush1.msra.mxu0 %v993
  %v995 = vand.u32 %v43, 4294901760
  %996 = vmatprep.subr.mxu0 %v995
  %v997 = vand.u32 %v42, 4294901760
  %998 = vmatpush1.msra.mxu0 %v997
  %v999 = vand.u32 %v41, 4294901760
  %1000 = vmatprep.subr.mxu0 %v999
  %v1001 = vand.u32 %v40, 4294901760
  %1002 = vmatpush1.msra.mxu0 %v1001
  %v1003 = vand.u32 %v39, 4294901760
  %1004 = vmatprep.subr.mxu0 %v1003
  %v1005 = vand.u32 %v38, 4294901760
  %1006 = vmatpush1.msra.mxu0 %v1005
  %v1007 = vand.u32 %v37, 4294901760
  %1008 = vmatprep.subr.mxu0 %v1007
  %v1009 = vand.u32 %v36, 4294901760
  %1010 = vmatpush1.msra.mxu0 %v1009
  %1011 = vmatprep.subr.mxu0 0.0
  %1012 = vmatpush2.msra.mxu0 0.0
  %1013 = vmatprep.subr.mxu0 0.0
  %1014 = vmatpush2.msra.mxu0 0.0
  %1015 = vmatprep.subr.mxu0 0.0
  %1016 = vmatpush2.msra.mxu0 0.0
  %1017 = vmatprep.subr.mxu0 0.0
  %1018 = vmatpush2.msra.mxu0 0.0
  %1019 = vmatprep.subr.mxu0 0.0
  %1020 = vmatpush2.msra.mxu0 0.0
  %1021 = vmatprep.subr.mxu0 0.0
  %1022 = vmatpush2.msra.mxu0 0.0
  %1023 = vmatprep.subr.mxu0 0.0
  %1024 = vmatpush2.msra.mxu0 0.0
  %1025 = vmatprep.subr.mxu0 0.0
  %1026 = vmatpush2.msra.mxu0 0.0
  %1027 = vmatprep.subr.mxu0 0.0
  %1028 = vmatpush2.msra.mxu0 0.0
  %1029 = vmatprep.subr.mxu0 0.0
  %1030 = vmatpush2.msra.mxu0 0.0
  %1031 = vmatprep.subr.mxu0 0.0
  %1032 = vmatpush2.msra.mxu0 0.0
  %1033 = vmatprep.subr.mxu0 0.0
  %1034 = vmatpush2.msra.mxu0 0.0
  %1035 = vmatprep.subr.mxu0 0.0
  %1036 = vmatpush2.msra.mxu0 0.0
  %1037 = vmatprep.subr.mxu0 0.0
  %1038 = vmatpush2.msra.mxu0 0.0
  %1039 = vmatprep.subr.mxu0 0.0
  %1040 = vmatpush2.msra.mxu0 0.0
  %1041 = vmatprep.subr.mxu0 0.0
  %1042 = vmatpush2.msra.mxu0 0.0
  %1043 = vmatprep.mubr.f32.mxu0 0.0
  %v1044 = vand.u32 %v20, 4294901760
  %v1045 = vsub.f32 %v20, %v1044
  %v1046 = vand.u32 %v1045, 4294901760
  %1047 = vmatmul.mubr.f32.gmra.mxu0 %v1046
  %v1048 = vpop.f32.mrf.mxu0
  %v1049 = vadd.f32 %v823, %v1048
  %v1050 = vpop.f32.mrf.mxu0
  %v1051 = vadd.f32 %v825, %v1050
  %1052 = vmatprep.mubr.f32.mxu0 0.0
  %v1053 = vand.u32 %v21, 4294901760
  %v1054 = vsub.f32 %v21, %v1053
  %v1055 = vand.u32 %v1054, 4294901760
  %1056 = vmatmul.mubr.f32.gmra.mxu0 %v1055
  %v1057 = vpop.f32.mrf.mxu0
  %v1058 = vadd.f32 %v831, %v1057
  %v1059 = vpop.f32.mrf.mxu0
  %v1060 = vadd.f32 %v833, %v1059
  %1061 = vmatprep.mubr.f32.mxu0 0.0
  %v1062 = vand.u32 %v22, 4294901760
  %v1063 = vsub.f32 %v22, %v1062
  %v1064 = vand.u32 %v1063, 4294901760
  %1065 = vmatmul.mubr.f32.gmra.mxu0 %v1064
  %v1066 = vpop.f32.mrf.mxu0
  %v1067 = vadd.f32 %v839, %v1066
  %v1068 = vpop.f32.mrf.mxu0
  %v1069 = vadd.f32 %v841, %v1068
  %1070 = vmatprep.mubr.f32.mxu0 0.0
  %v1071 = vand.u32 %v23, 4294901760
  %v1072 = vsub.f32 %v23, %v1071
  %v1073 = vand.u32 %v1072, 4294901760
  %1074 = vmatmul.mubr.f32.gmra.mxu0 %v1073
  %v1075 = vpop.f32.mrf.mxu0
  %v1076 = vadd.f32 %v847, %v1075
  %v1077 = vpop.f32.mrf.mxu0
  %v1078 = vadd.f32 %v849, %v1077
  %1079 = vmatprep.mubr.f32.mxu0 0.0
  %v1080 = vand.u32 %v24, 4294901760
  %v1081 = vsub.f32 %v24, %v1080
  %v1082 = vand.u32 %v1081, 4294901760
  %1083 = vmatmul.mubr.f32.gmra.mxu0 %v1082
  %v1084 = vpop.f32.mrf.mxu0
  %v1085 = vadd.f32 %v855, %v1084
  %v1086 = vpop.f32.mrf.mxu0
  %v1087 = vadd.f32 %v857, %v1086
  %1088 = vmatprep.mubr.f32.mxu0 0.0
  %v1089 = vand.u32 %v25, 4294901760
  %v1090 = vsub.f32 %v25, %v1089
  %v1091 = vand.u32 %v1090, 4294901760
  %1092 = vmatmul.mubr.f32.gmra.mxu0 %v1091
  %v1093 = vpop.f32.mrf.mxu0
  %v1094 = vadd.f32 %v863, %v1093
  %v1095 = vpop.f32.mrf.mxu0
  %v1096 = vadd.f32 %v865, %v1095
  %1097 = vmatprep.mubr.f32.mxu0 0.0
  %v1098 = vand.u32 %v26, 4294901760
  %v1099 = vsub.f32 %v26, %v1098
  %v1100 = vand.u32 %v1099, 4294901760
  %1101 = vmatmul.mubr.f32.gmra.mxu0 %v1100
  %v1102 = vpop.f32.mrf.mxu0
  %v1103 = vadd.f32 %v871, %v1102
  %v1104 = vpop.f32.mrf.mxu0
  %v1105 = vadd.f32 %v873, %v1104
  %1106 = vmatprep.mubr.f32.mxu0 0.0
  %v1107 = vand.u32 %v27, 4294901760
  %v1108 = vsub.f32 %v27, %v1107
  %v1109 = vand.u32 %v1108, 4294901760
  %1110 = vmatmul.mubr.f32.gmra.mxu0 %v1109
  %v1111 = vpop.f32.mrf.mxu0
  %v1112 = vadd.f32 %v879, %v1111
  %v1113 = vpop.f32.mrf.mxu0
  %v1114 = vadd.f32 %v881, %v1113
  %1115 = vmatprep.mubr.f32.mxu0 0.0
  %v1116 = vand.u32 %v28, 4294901760
  %v1117 = vsub.f32 %v28, %v1116
  %v1118 = vand.u32 %v1117, 4294901760
  %1119 = vmatmul.mubr.f32.gmra.mxu0 %v1118
  %v1120 = vpop.f32.mrf.mxu0
  %v1121 = vadd.f32 %v887, %v1120
  %v1122 = vpop.f32.mrf.mxu0
  %v1123 = vadd.f32 %v889, %v1122
  %1124 = vmatprep.mubr.f32.mxu0 0.0
  %v1125 = vand.u32 %v29, 4294901760
  %v1126 = vsub.f32 %v29, %v1125
  %v1127 = vand.u32 %v1126, 4294901760
  %1128 = vmatmul.mubr.f32.gmra.mxu0 %v1127
  %v1129 = vpop.f32.mrf.mxu0
  %v1130 = vadd.f32 %v895, %v1129
  %v1131 = vpop.f32.mrf.mxu0
  %v1132 = vadd.f32 %v897, %v1131
  %1133 = vmatprep.mubr.f32.mxu0 0.0
  %v1134 = vand.u32 %v30, 4294901760
  %v1135 = vsub.f32 %v30, %v1134
  %v1136 = vand.u32 %v1135, 4294901760
  %1137 = vmatmul.mubr.f32.gmra.mxu0 %v1136
  %v1138 = vpop.f32.mrf.mxu0
  %v1139 = vadd.f32 %v903, %v1138
  %v1140 = vpop.f32.mrf.mxu0
  %v1141 = vadd.f32 %v905, %v1140
  %1142 = vmatprep.mubr.f32.mxu0 0.0
  %v1143 = vand.u32 %v31, 4294901760
  %v1144 = vsub.f32 %v31, %v1143
  %v1145 = vand.u32 %v1144, 4294901760
  %1146 = vmatmul.mubr.f32.gmra.mxu0 %v1145
  %v1147 = vpop.f32.mrf.mxu0
  %v1148 = vadd.f32 %v911, %v1147
  %v1149 = vpop.f32.mrf.mxu0
  %v1150 = vadd.f32 %v913, %v1149
  %1151 = vmatprep.mubr.f32.mxu0 0.0
  %v1152 = vand.u32 %v32, 4294901760
  %v1153 = vsub.f32 %v32, %v1152
  %v1154 = vand.u32 %v1153, 4294901760
  %1155 = vmatmul.mubr.f32.gmra.mxu0 %v1154
  %v1156 = vpop.f32.mrf.mxu0
  %v1157 = vadd.f32 %v919, %v1156
  %v1158 = vpop.f32.mrf.mxu0
  %v1159 = vadd.f32 %v921, %v1158
  %1160 = vmatprep.mubr.f32.mxu0 0.0
  %v1161 = vand.u32 %v33, 4294901760
  %v1162 = vsub.f32 %v33, %v1161
  %v1163 = vand.u32 %v1162, 4294901760
  %1164 = vmatmul.mubr.f32.gmra.mxu0 %v1163
  %v1165 = vpop.f32.mrf.mxu0
  %v1166 = vadd.f32 %v927, %v1165
  %v1167 = vpop.f32.mrf.mxu0
  %v1168 = vadd.f32 %v929, %v1167
  %1169 = vmatprep.mubr.f32.mxu0 0.0
  %v1170 = vand.u32 %v34, 4294901760
  %v1171 = vsub.f32 %v34, %v1170
  %v1172 = vand.u32 %v1171, 4294901760
  %1173 = vmatmul.mubr.f32.gmra.mxu0 %v1172
  %v1174 = vpop.f32.mrf.mxu0
  %v1175 = vadd.f32 %v935, %v1174
  %v1176 = vpop.f32.mrf.mxu0
  %v1177 = vadd.f32 %v937, %v1176
  %1178 = vmatprep.mubr.f32.mxu0 0.0
  %v1179 = vand.u32 %v35, 4294901760
  %v1180 = vsub.f32 %v35, %v1179
  %v1181 = vand.u32 %v1180, 4294901760
  %1182 = vmatmul.mubr.f32.gmra.mxu0 %v1181
  %v1183 = vpop.f32.mrf.mxu0
  %v1184 = vadd.f32 %v943, %v1183
  %v1185 = vpop.f32.mrf.mxu0
  %v1186 = vadd.f32 %v945, %v1185
  %1187 = vdwg.mxu0
  %v1188 = vand.u32 %v67, 4294901760
  %v1189 = vsub.f32 %v67, %v1188
  %v1190 = vand.u32 %v1189, 4294901760
  %1191 = vmatprep.subr.mxu0 %v1190
  %v1192 = vand.u32 %v66, 4294901760
  %v1193 = vsub.f32 %v66, %v1192
  %v1194 = vand.u32 %v1193, 4294901760
  %1195 = vmatpush1.msra.mxu0 %v1194
  %v1196 = vand.u32 %v65, 4294901760
  %v1197 = vsub.f32 %v65, %v1196
  %v1198 = vand.u32 %v1197, 4294901760
  %1199 = vmatprep.subr.mxu0 %v1198
  %v1200 = vand.u32 %v64, 4294901760
  %v1201 = vsub.f32 %v64, %v1200
  %v1202 = vand.u32 %v1201, 4294901760
  %1203 = vmatpush1.msra.mxu0 %v1202
  %v1204 = vand.u32 %v63, 4294901760
  %v1205 = vsub.f32 %v63, %v1204
  %v1206 = vand.u32 %v1205, 4294901760
  %1207 = vmatprep.subr.mxu0 %v1206
  %v1208 = vand.u32 %v62, 4294901760
  %v1209 = vsub.f32 %v62, %v1208
  %v1210 = vand.u32 %v1209, 4294901760
  %1211 = vmatpush1.msra.mxu0 %v1210
  %v1212 = vand.u32 %v61, 4294901760
  %v1213 = vsub.f32 %v61, %v1212
  %v1214 = vand.u32 %v1213, 4294901760
  %1215 = vmatprep.subr.mxu0 %v1214
  %v1216 = vand.u32 %v60, 4294901760
  %v1217 = vsub.f32 %v60, %v1216
  %v1218 = vand.u32 %v1217, 4294901760
  %1219 = vmatpush1.msra.mxu0 %v1218
  %v1220 = vand.u32 %v59, 4294901760
  %v1221 = vsub.f32 %v59, %v1220
  %v1222 = vand.u32 %v1221, 4294901760
  %1223 = vmatprep.subr.mxu0 %v1222
  %v1224 = vand.u32 %v58, 4294901760
  %v1225 = vsub.f32 %v58, %v1224
  %v1226 = vand.u32 %v1225, 4294901760
  %1227 = vmatpush1.msra.mxu0 %v1226
  %v1228 = vand.u32 %v57, 4294901760
  %v1229 = vsub.f32 %v57, %v1228
  %v1230 = vand.u32 %v1229, 4294901760
  %1231 = vmatprep.subr.mxu0 %v1230
  %v1232 = vand.u32 %v56, 4294901760
  %v1233 = vsub.f32 %v56, %v1232
  %v1234 = vand.u32 %v1233, 4294901760
  %1235 = vmatpush1.msra.mxu0 %v1234
  %v1236 = vand.u32 %v55, 4294901760
  %v1237 = vsub.f32 %v55, %v1236
  %v1238 = vand.u32 %v1237, 4294901760
  %1239 = vmatprep.subr.mxu0 %v1238
  %v1240 = vand.u32 %v54, 4294901760
  %v1241 = vsub.f32 %v54, %v1240
  %v1242 = vand.u32 %v1241, 4294901760
  %1243 = vmatpush1.msra.mxu0 %v1242
  %v1244 = vand.u32 %v53, 4294901760
  %v1245 = vsub.f32 %v53, %v1244
  %v1246 = vand.u32 %v1245, 4294901760
  %1247 = vmatprep.subr.mxu0 %v1246
  %v1248 = vand.u32 %v52, 4294901760
  %v1249 = vsub.f32 %v52, %v1248
  %v1250 = vand.u32 %v1249, 4294901760
  %1251 = vmatpush1.msra.mxu0 %v1250
  %v1252 = vand.u32 %v51, 4294901760
  %v1253 = vsub.f32 %v51, %v1252
  %v1254 = vand.u32 %v1253, 4294901760
  %1255 = vmatprep.subr.mxu0 %v1254
  %v1256 = vand.u32 %v50, 4294901760
  %v1257 = vsub.f32 %v50, %v1256
  %v1258 = vand.u32 %v1257, 4294901760
  %1259 = vmatpush1.msra.mxu0 %v1258
  %v1260 = vand.u32 %v49, 4294901760
  %v1261 = vsub.f32 %v49, %v1260
  %v1262 = vand.u32 %v1261, 4294901760
  %1263 = vmatprep.subr.mxu0 %v1262
  %v1264 = vand.u32 %v48, 4294901760
  %v1265 = vsub.f32 %v48, %v1264
  %v1266 = vand.u32 %v1265, 4294901760
  %1267 = vmatpush1.msra.mxu0 %v1266
  %v1268 = vand.u32 %v47, 4294901760
  %v1269 = vsub.f32 %v47, %v1268
  %v1270 = vand.u32 %v1269, 4294901760
  %1271 = vmatprep.subr.mxu0 %v1270
  %v1272 = vand.u32 %v46, 4294901760
  %v1273 = vsub.f32 %v46, %v1272
  %v1274 = vand.u32 %v1273, 4294901760
  %1275 = vmatpush1.msra.mxu0 %v1274
  %v1276 = vand.u32 %v45, 4294901760
  %v1277 = vsub.f32 %v45, %v1276
  %v1278 = vand.u32 %v1277, 4294901760
  %1279 = vmatprep.subr.mxu0 %v1278
  %v1280 = vand.u32 %v44, 4294901760
  %v1281 = vsub.f32 %v44, %v1280
  %v1282 = vand.u32 %v1281, 4294901760
  %1283 = vmatpush1.msra.mxu0 %v1282
  %v1284 = vand.u32 %v43, 4294901760
  %v1285 = vsub.f32 %v43, %v1284
  %v1286 = vand.u32 %v1285, 4294901760
  %1287 = vmatprep.subr.mxu0 %v1286
  %v1288 = vand.u32 %v42, 4294901760
  %v1289 = vsub.f32 %v42, %v1288
  %v1290 = vand.u32 %v1289, 4294901760
  %1291 = vmatpush1.msra.mxu0 %v1290
  %v1292 = vand.u32 %v41, 4294901760
  %v1293 = vsub.f32 %v41, %v1292
  %v1294 = vand.u32 %v1293, 4294901760
  %1295 = vmatprep.subr.mxu0 %v1294
  %v1296 = vand.u32 %v40, 4294901760
  %v1297 = vsub.f32 %v40, %v1296
  %v1298 = vand.u32 %v1297, 4294901760
  %1299 = vmatpush1.msra.mxu0 %v1298
  %v1300 = vand.u32 %v39, 4294901760
  %v1301 = vsub.f32 %v39, %v1300
  %v1302 = vand.u32 %v1301, 4294901760
  %1303 = vmatprep.subr.mxu0 %v1302
  %v1304 = vand.u32 %v38, 4294901760
  %v1305 = vsub.f32 %v38, %v1304
  %v1306 = vand.u32 %v1305, 4294901760
  %1307 = vmatpush1.msra.mxu0 %v1306
  %v1308 = vand.u32 %v37, 4294901760
  %v1309 = vsub.f32 %v37, %v1308
  %v1310 = vand.u32 %v1309, 4294901760
  %1311 = vmatprep.subr.mxu0 %v1310
  %v1312 = vand.u32 %v36, 4294901760
  %v1313 = vsub.f32 %v36, %v1312
  %v1314 = vand.u32 %v1313, 4294901760
  %1315 = vmatpush1.msra.mxu0 %v1314
  %1316 = vmatprep.subr.mxu0 0.0
  %1317 = vmatpush2.msra.mxu0 0.0
  %1318 = vmatprep.subr.mxu0 0.0
  %1319 = vmatpush2.msra.mxu0 0.0
  %1320 = vmatprep.subr.mxu0 0.0
  %1321 = vmatpush2.msra.mxu0 0.0
  %1322 = vmatprep.subr.mxu0 0.0
  %1323 = vmatpush2.msra.mxu0 0.0
  %1324 = vmatprep.subr.mxu0 0.0
  %1325 = vmatpush2.msra.mxu0 0.0
  %1326 = vmatprep.subr.mxu0 0.0
  %1327 = vmatpush2.msra.mxu0 0.0
  %1328 = vmatprep.subr.mxu0 0.0
  %1329 = vmatpush2.msra.mxu0 0.0
  %1330 = vmatprep.subr.mxu0 0.0
  %1331 = vmatpush2.msra.mxu0 0.0
  %1332 = vmatprep.subr.mxu0 0.0
  %1333 = vmatpush2.msra.mxu0 0.0
  %1334 = vmatprep.subr.mxu0 0.0
  %1335 = vmatpush2.msra.mxu0 0.0
  %1336 = vmatprep.subr.mxu0 0.0
  %1337 = vmatpush2.msra.mxu0 0.0
  %1338 = vmatprep.subr.mxu0 0.0
  %1339 = vmatpush2.msra.mxu0 0.0
  %1340 = vmatprep.subr.mxu0 0.0
  %1341 = vmatpush2.msra.mxu0 0.0
  %1342 = vmatprep.subr.mxu0 0.0
  %1343 = vmatpush2.msra.mxu0 0.0
  %1344 = vmatprep.subr.mxu0 0.0
  %1345 = vmatpush2.msra.mxu0 0.0
  %1346 = vmatprep.subr.mxu0 0.0
  %1347 = vmatpush2.msra.mxu0 0.0
  %1348 = vmatprep.mubr.f32.mxu0 0.0
  %v1349 = vand.u32 %v20, 4294901760
  %1350 = vmatmul.mubr.f32.gmra.mxu0 %v1349
  %v1351 = vpop.f32.mrf.mxu0
  %v1352 = vadd.f32 %v1049, %v1351
  %v1353 = vpop.f32.mrf.mxu0
  %v1354 = vadd.f32 %v1051, %v1353
  %1355 = vmatprep.mubr.f32.mxu0 0.0
  %v1356 = vand.u32 %v21, 4294901760
  %1357 = vmatmul.mubr.f32.gmra.mxu0 %v1356
  %v1358 = vpop.f32.mrf.mxu0
  %v1359 = vadd.f32 %v1058, %v1358
  %v1360 = vpop.f32.mrf.mxu0
  %v1361 = vadd.f32 %v1060, %v1360
  %1362 = vmatprep.mubr.f32.mxu0 0.0
  %v1363 = vand.u32 %v22, 4294901760
  %1364 = vmatmul.mubr.f32.gmra.mxu0 %v1363
  %v1365 = vpop.f32.mrf.mxu0
  %v1366 = vadd.f32 %v1067, %v1365
  %v1367 = vpop.f32.mrf.mxu0
  %v1368 = vadd.f32 %v1069, %v1367
  %1369 = vmatprep.mubr.f32.mxu0 0.0
  %v1370 = vand.u32 %v23, 4294901760
  %1371 = vmatmul.mubr.f32.gmra.mxu0 %v1370
  %v1372 = vpop.f32.mrf.mxu0
  %v1373 = vadd.f32 %v1076, %v1372
  %v1374 = vpop.f32.mrf.mxu0
  %v1375 = vadd.f32 %v1078, %v1374
  %1376 = vmatprep.mubr.f32.mxu0 0.0
  %v1377 = vand.u32 %v24, 4294901760
  %1378 = vmatmul.mubr.f32.gmra.mxu0 %v1377
  %v1379 = vpop.f32.mrf.mxu0
  %v1380 = vadd.f32 %v1085, %v1379
  %v1381 = vpop.f32.mrf.mxu0
  %v1382 = vadd.f32 %v1087, %v1381
  %1383 = vmatprep.mubr.f32.mxu0 0.0
  %v1384 = vand.u32 %v25, 4294901760
  %1385 = vmatmul.mubr.f32.gmra.mxu0 %v1384
  %v1386 = vpop.f32.mrf.mxu0
  %v1387 = vadd.f32 %v1094, %v1386
  %v1388 = vpop.f32.mrf.mxu0
  %v1389 = vadd.f32 %v1096, %v1388
  %1390 = vmatprep.mubr.f32.mxu0 0.0
  %v1391 = vand.u32 %v26, 4294901760
  %1392 = vmatmul.mubr.f32.gmra.mxu0 %v1391
  %v1393 = vpop.f32.mrf.mxu0
  %v1394 = vadd.f32 %v1103, %v1393
  %v1395 = vpop.f32.mrf.mxu0
  %v1396 = vadd.f32 %v1105, %v1395
  %1397 = vmatprep.mubr.f32.mxu0 0.0
  %v1398 = vand.u32 %v27, 4294901760
  %1399 = vmatmul.mubr.f32.gmra.mxu0 %v1398
  %v1400 = vpop.f32.mrf.mxu0
  %v1401 = vadd.f32 %v1112, %v1400
  %v1402 = vpop.f32.mrf.mxu0
  %v1403 = vadd.f32 %v1114, %v1402
  %1404 = vmatprep.mubr.f32.mxu0 0.0
  %v1405 = vand.u32 %v28, 4294901760
  %1406 = vmatmul.mubr.f32.gmra.mxu0 %v1405
  %v1407 = vpop.f32.mrf.mxu0
  %v1408 = vadd.f32 %v1121, %v1407
  %v1409 = vpop.f32.mrf.mxu0
  %v1410 = vadd.f32 %v1123, %v1409
  %1411 = vmatprep.mubr.f32.mxu0 0.0
  %v1412 = vand.u32 %v29, 4294901760
  %1413 = vmatmul.mubr.f32.gmra.mxu0 %v1412
  %v1414 = vpop.f32.mrf.mxu0
  %v1415 = vadd.f32 %v1130, %v1414
  %v1416 = vpop.f32.mrf.mxu0
  %v1417 = vadd.f32 %v1132, %v1416
  %1418 = vmatprep.mubr.f32.mxu0 0.0
  %v1419 = vand.u32 %v30, 4294901760
  %1420 = vmatmul.mubr.f32.gmra.mxu0 %v1419
  %v1421 = vpop.f32.mrf.mxu0
  %v1422 = vadd.f32 %v1139, %v1421
  %v1423 = vpop.f32.mrf.mxu0
  %v1424 = vadd.f32 %v1141, %v1423
  %1425 = vmatprep.mubr.f32.mxu0 0.0
  %v1426 = vand.u32 %v31, 4294901760
  %1427 = vmatmul.mubr.f32.gmra.mxu0 %v1426
  %v1428 = vpop.f32.mrf.mxu0
  %v1429 = vadd.f32 %v1148, %v1428
  %v1430 = vpop.f32.mrf.mxu0
  %v1431 = vadd.f32 %v1150, %v1430
  %1432 = vmatprep.mubr.f32.mxu0 0.0
  %v1433 = vand.u32 %v32, 4294901760
  %1434 = vmatmul.mubr.f32.gmra.mxu0 %v1433
  %v1435 = vpop.f32.mrf.mxu0
  %v1436 = vadd.f32 %v1157, %v1435
  %v1437 = vpop.f32.mrf.mxu0
  %v1438 = vadd.f32 %v1159, %v1437
  %1439 = vmatprep.mubr.f32.mxu0 0.0
  %v1440 = vand.u32 %v33, 4294901760
  %1441 = vmatmul.mubr.f32.gmra.mxu0 %v1440
  %v1442 = vpop.f32.mrf.mxu0
  %v1443 = vadd.f32 %v1166, %v1442
  %v1444 = vpop.f32.mrf.mxu0
  %v1445 = vadd.f32 %v1168, %v1444
  %1446 = vmatprep.mubr.f32.mxu0 0.0
  %v1447 = vand.u32 %v34, 4294901760
  %1448 = vmatmul.mubr.f32.gmra.mxu0 %v1447
  %v1449 = vpop.f32.mrf.mxu0
  %v1450 = vadd.f32 %v1175, %v1449
  %v1451 = vpop.f32.mrf.mxu0
  %v1452 = vadd.f32 %v1177, %v1451
  %1453 = vmatprep.mubr.f32.mxu0 0.0
  %v1454 = vand.u32 %v35, 4294901760
  %1455 = vmatmul.mubr.f32.gmra.mxu0 %v1454
  %v1456 = vpop.f32.mrf.mxu0
  %v1457 = vadd.f32 %v1184, %v1456
  %v1458 = vpop.f32.mrf.mxu0
  %v1459 = vadd.f32 %v1186, %v1458
  %1460 = vdwg.mxu0
  %v1461 = vand.u32 %v67, 4294901760
  %1462 = vmatprep.subr.mxu0 %v1461
  %v1463 = vand.u32 %v66, 4294901760
  %1464 = vmatpush1.msra.mxu0 %v1463
  %v1465 = vand.u32 %v65, 4294901760
  %1466 = vmatprep.subr.mxu0 %v1465
  %v1467 = vand.u32 %v64, 4294901760
  %1468 = vmatpush1.msra.mxu0 %v1467
  %v1469 = vand.u32 %v63, 4294901760
  %1470 = vmatprep.subr.mxu0 %v1469
  %v1471 = vand.u32 %v62, 4294901760
  %1472 = vmatpush1.msra.mxu0 %v1471
  %v1473 = vand.u32 %v61, 4294901760
  %1474 = vmatprep.subr.mxu0 %v1473
  %v1475 = vand.u32 %v60, 4294901760
  %1476 = vmatpush1.msra.mxu0 %v1475
  %v1477 = vand.u32 %v59, 4294901760
  %1478 = vmatprep.subr.mxu0 %v1477
  %v1479 = vand.u32 %v58, 4294901760
  %1480 = vmatpush1.msra.mxu0 %v1479
  %v1481 = vand.u32 %v57, 4294901760
  %1482 = vmatprep.subr.mxu0 %v1481
  %v1483 = vand.u32 %v56, 4294901760
  %1484 = vmatpush1.msra.mxu0 %v1483
  %v1485 = vand.u32 %v55, 4294901760
  %1486 = vmatprep.subr.mxu0 %v1485
  %v1487 = vand.u32 %v54, 4294901760
  %1488 = vmatpush1.msra.mxu0 %v1487
  %v1489 = vand.u32 %v53, 4294901760
  %1490 = vmatprep.subr.mxu0 %v1489
  %v1491 = vand.u32 %v52, 4294901760
  %1492 = vmatpush1.msra.mxu0 %v1491
  %v1493 = vand.u32 %v51, 4294901760
  %1494 = vmatprep.subr.mxu0 %v1493
  %v1495 = vand.u32 %v50, 4294901760
  %1496 = vmatpush1.msra.mxu0 %v1495
  %v1497 = vand.u32 %v49, 4294901760
  %1498 = vmatprep.subr.mxu0 %v1497
  %v1499 = vand.u32 %v48, 4294901760
  %1500 = vmatpush1.msra.mxu0 %v1499
  %v1501 = vand.u32 %v47, 4294901760
  %1502 = vmatprep.subr.mxu0 %v1501
  %v1503 = vand.u32 %v46, 4294901760
  %1504 = vmatpush1.msra.mxu0 %v1503
  %v1505 = vand.u32 %v45, 4294901760
  %1506 = vmatprep.subr.mxu0 %v1505
  %v1507 = vand.u32 %v44, 4294901760
  %1508 = vmatpush1.msra.mxu0 %v1507
  %v1509 = vand.u32 %v43, 4294901760
  %1510 = vmatprep.subr.mxu0 %v1509
  %v1511 = vand.u32 %v42, 4294901760
  %1512 = vmatpush1.msra.mxu0 %v1511
  %v1513 = vand.u32 %v41, 4294901760
  %1514 = vmatprep.subr.mxu0 %v1513
  %v1515 = vand.u32 %v40, 4294901760
  %1516 = vmatpush1.msra.mxu0 %v1515
  %v1517 = vand.u32 %v39, 4294901760
  %1518 = vmatprep.subr.mxu0 %v1517
  %v1519 = vand.u32 %v38, 4294901760
  %1520 = vmatpush1.msra.mxu0 %v1519
  %v1521 = vand.u32 %v37, 4294901760
  %1522 = vmatprep.subr.mxu0 %v1521
  %v1523 = vand.u32 %v36, 4294901760
  %1524 = vmatpush1.msra.mxu0 %v1523
  %1525 = vmatprep.subr.mxu0 0.0
  %1526 = vmatpush2.msra.mxu0 0.0
  %1527 = vmatprep.subr.mxu0 0.0
  %1528 = vmatpush2.msra.mxu0 0.0
  %1529 = vmatprep.subr.mxu0 0.0
  %1530 = vmatpush2.msra.mxu0 0.0
  %1531 = vmatprep.subr.mxu0 0.0
  %1532 = vmatpush2.msra.mxu0 0.0
  %1533 = vmatprep.subr.mxu0 0.0
  %1534 = vmatpush2.msra.mxu0 0.0
  %1535 = vmatprep.subr.mxu0 0.0
  %1536 = vmatpush2.msra.mxu0 0.0
  %1537 = vmatprep.subr.mxu0 0.0
  %1538 = vmatpush2.msra.mxu0 0.0
  %1539 = vmatprep.subr.mxu0 0.0
  %1540 = vmatpush2.msra.mxu0 0.0
  %1541 = vmatprep.subr.mxu0 0.0
  %1542 = vmatpush2.msra.mxu0 0.0
  %1543 = vmatprep.subr.mxu0 0.0
  %1544 = vmatpush2.msra.mxu0 0.0
  %1545 = vmatprep.subr.mxu0 0.0
  %1546 = vmatpush2.msra.mxu0 0.0
  %1547 = vmatprep.subr.mxu0 0.0
  %1548 = vmatpush2.msra.mxu0 0.0
  %1549 = vmatprep.subr.mxu0 0.0
  %1550 = vmatpush2.msra.mxu0 0.0
  %1551 = vmatprep.subr.mxu0 0.0
  %1552 = vmatpush2.msra.mxu0 0.0
  %1553 = vmatprep.subr.mxu0 0.0
  %1554 = vmatpush2.msra.mxu0 0.0
  %1555 = vmatprep.subr.mxu0 0.0
  %1556 = vmatpush2.msra.mxu0 0.0
  %1557 = vmatprep.mubr.f32.mxu0 0.0
  %v1558 = vand.u32 %v20, 4294901760
  %1559 = vmatmul.mubr.f32.gmra.mxu0 %v1558
  %v1560 = vpop.f32.mrf.mxu0
  %v1561 = vadd.f32 %v1352, %v1560
  %v1562 = vpop.f32.mrf.mxu0
  %v1563 = vadd.f32 %v1354, %v1562
  %1564 = vmatprep.mubr.f32.mxu0 0.0
  %v1565 = vand.u32 %v21, 4294901760
  %1566 = vmatmul.mubr.f32.gmra.mxu0 %v1565
  %v1567 = vpop.f32.mrf.mxu0
  %v1568 = vadd.f32 %v1359, %v1567
  %v1569 = vpop.f32.mrf.mxu0
  %v1570 = vadd.f32 %v1361, %v1569
  %1571 = vmatprep.mubr.f32.mxu0 0.0
  %v1572 = vand.u32 %v22, 4294901760
  %1573 = vmatmul.mubr.f32.gmra.mxu0 %v1572
  %v1574 = vpop.f32.mrf.mxu0
  %v1575 = vadd.f32 %v1366, %v1574
  %v1576 = vpop.f32.mrf.mxu0
  %v1577 = vadd.f32 %v1368, %v1576
  %1578 = vmatprep.mubr.f32.mxu0 0.0
  %v1579 = vand.u32 %v23, 4294901760
  %1580 = vmatmul.mubr.f32.gmra.mxu0 %v1579
  %v1581 = vpop.f32.mrf.mxu0
  %v1582 = vadd.f32 %v1373, %v1581
  %v1583 = vpop.f32.mrf.mxu0
  %v1584 = vadd.f32 %v1375, %v1583
  %1585 = vmatprep.mubr.f32.mxu0 0.0
  %v1586 = vand.u32 %v24, 4294901760
  %1587 = vmatmul.mubr.f32.gmra.mxu0 %v1586
  %v1588 = vpop.f32.mrf.mxu0
  %v1589 = vadd.f32 %v1380, %v1588
  %v1590 = vpop.f32.mrf.mxu0
  %v1591 = vadd.f32 %v1382, %v1590
  %1592 = vmatprep.mubr.f32.mxu0 0.0
  %v1593 = vand.u32 %v25, 4294901760
  %1594 = vmatmul.mubr.f32.gmra.mxu0 %v1593
  %v1595 = vpop.f32.mrf.mxu0
  %v1596 = vadd.f32 %v1387, %v1595
  %v1597 = vpop.f32.mrf.mxu0
  %v1598 = vadd.f32 %v1389, %v1597
  %1599 = vmatprep.mubr.f32.mxu0 0.0
  %v1600 = vand.u32 %v26, 4294901760
  %1601 = vmatmul.mubr.f32.gmra.mxu0 %v1600
  %v1602 = vpop.f32.mrf.mxu0
  %v1603 = vadd.f32 %v1394, %v1602
  %v1604 = vpop.f32.mrf.mxu0
  %v1605 = vadd.f32 %v1396, %v1604
  %1606 = vmatprep.mubr.f32.mxu0 0.0
  %v1607 = vand.u32 %v27, 4294901760
  %1608 = vmatmul.mubr.f32.gmra.mxu0 %v1607
  %v1609 = vpop.f32.mrf.mxu0
  %v1610 = vadd.f32 %v1401, %v1609
  %v1611 = vpop.f32.mrf.mxu0
  %v1612 = vadd.f32 %v1403, %v1611
  %1613 = vmatprep.mubr.f32.mxu0 0.0
  %v1614 = vand.u32 %v28, 4294901760
  %1615 = vmatmul.mubr.f32.gmra.mxu0 %v1614
  %v1616 = vpop.f32.mrf.mxu0
  %v1617 = vadd.f32 %v1408, %v1616
  %v1618 = vpop.f32.mrf.mxu0
  %v1619 = vadd.f32 %v1410, %v1618
  %1620 = vmatprep.mubr.f32.mxu0 0.0
  %v1621 = vand.u32 %v29, 4294901760
  %1622 = vmatmul.mubr.f32.gmra.mxu0 %v1621
  %v1623 = vpop.f32.mrf.mxu0
  %v1624 = vadd.f32 %v1415, %v1623
  %v1625 = vpop.f32.mrf.mxu0
  %v1626 = vadd.f32 %v1417, %v1625
  %1627 = vmatprep.mubr.f32.mxu0 0.0
  %v1628 = vand.u32 %v30, 4294901760
  %1629 = vmatmul.mubr.f32.gmra.mxu0 %v1628
  %v1630 = vpop.f32.mrf.mxu0
  %v1631 = vadd.f32 %v1422, %v1630
  %v1632 = vpop.f32.mrf.mxu0
  %v1633 = vadd.f32 %v1424, %v1632
  %1634 = vmatprep.mubr.f32.mxu0 0.0
  %v1635 = vand.u32 %v31, 4294901760
  %1636 = vmatmul.mubr.f32.gmra.mxu0 %v1635
  %v1637 = vpop.f32.mrf.mxu0
  %v1638 = vadd.f32 %v1429, %v1637
  %v1639 = vpop.f32.mrf.mxu0
  %v1640 = vadd.f32 %v1431, %v1639
  %1641 = vmatprep.mubr.f32.mxu0 0.0
  %v1642 = vand.u32 %v32, 4294901760
  %1643 = vmatmul.mubr.f32.gmra.mxu0 %v1642
  %v1644 = vpop.f32.mrf.mxu0
  %v1645 = vadd.f32 %v1436, %v1644
  %v1646 = vpop.f32.mrf.mxu0
  %v1647 = vadd.f32 %v1438, %v1646
  %1648 = vmatprep.mubr.f32.mxu0 0.0
  %v1649 = vand.u32 %v33, 4294901760
  %1650 = vmatmul.mubr.f32.gmra.mxu0 %v1649
  %v1651 = vpop.f32.mrf.mxu0
  %v1652 = vadd.f32 %v1443, %v1651
  %v1653 = vpop.f32.mrf.mxu0
  %v1654 = vadd.f32 %v1445, %v1653
  %1655 = vmatprep.mubr.f32.mxu0 0.0
  %v1656 = vand.u32 %v34, 4294901760
  %1657 = vmatmul.mubr.f32.gmra.mxu0 %v1656
  %v1658 = vpop.f32.mrf.mxu0
  %v1659 = vadd.f32 %v1450, %v1658
  %v1660 = vpop.f32.mrf.mxu0
  %v1661 = vadd.f32 %v1452, %v1660
  %1662 = vmatprep.mubr.f32.mxu0 0.0
  %v1663 = vand.u32 %v35, 4294901760
  %1664 = vmatmul.mubr.f32.gmra.mxu0 %v1663
  %v1665 = vpop.f32.mrf.mxu0
  %v1666 = vadd.f32 %v1457, %v1665
  %v1667 = vpop.f32.mrf.mxu0
  %v1668 = vadd.f32 %v1459, %v1667
  %1669 = vdwg.mxu0
  %v1670 = vmul.f32 %v1561, 0.2
  %v1671 = vmul.f32 %v1563, 0.2
  %v1672 = vmul.f32 %v1568, 0.2
  %v1673 = vmul.f32 %v1570, 0.2
  %v1674 = vmul.f32 %v1575, 0.2
  %v1675 = vmul.f32 %v1577, 0.2
  %v1676 = vmul.f32 %v1582, 0.2
  %v1677 = vmul.f32 %v1584, 0.2
  %v1678 = vmul.f32 %v1589, 0.2
  %v1679 = vmul.f32 %v1591, 0.2
  %v1680 = vmul.f32 %v1596, 0.2
  %v1681 = vmul.f32 %v1598, 0.2
  %v1682 = vmul.f32 %v1603, 0.2
  %v1683 = vmul.f32 %v1605, 0.2
  %v1684 = vmul.f32 %v1610, 0.2
  %v1685 = vmul.f32 %v1612, 0.2
  %v1686 = vmul.f32 %v1617, 0.2
  %v1687 = vmul.f32 %v1619, 0.2
  %v1688 = vmul.f32 %v1624, 0.2
  %v1689 = vmul.f32 %v1626, 0.2
  %v1690 = vmul.f32 %v1631, 0.2
  %v1691 = vmul.f32 %v1633, 0.2
  %v1692 = vmul.f32 %v1638, 0.2
  %v1693 = vmul.f32 %v1640, 0.2
  %v1694 = vmul.f32 %v1645, 0.2
  %v1695 = vmul.f32 %v1647, 0.2
  %v1696 = vmul.f32 %v1652, 0.2
  %v1697 = vmul.f32 %v1654, 0.2
  %v1698 = vmul.f32 %v1659, 0.2
  %v1699 = vmul.f32 %v1661, 0.2
  %v1700 = vmul.f32 %v1666, 0.2
  %v1701 = vmul.f32 %v1668, 0.2
  %v1702 = vmax.f32 %v1561, %v1670
  %v1703 = vmax.f32 %v1563, %v1671
  %v1704 = vmax.f32 %v1568, %v1672
  %v1705 = vmax.f32 %v1570, %v1673
  %v1706 = vmax.f32 %v1575, %v1674
  %v1707 = vmax.f32 %v1577, %v1675
  %v1708 = vmax.f32 %v1582, %v1676
  %v1709 = vmax.f32 %v1584, %v1677
  %v1710 = vmax.f32 %v1589, %v1678
  %v1711 = vmax.f32 %v1591, %v1679
  %v1712 = vmax.f32 %v1596, %v1680
  %v1713 = vmax.f32 %v1598, %v1681
  %v1714 = vmax.f32 %v1603, %v1682
  %v1715 = vmax.f32 %v1605, %v1683
  %v1716 = vmax.f32 %v1610, %v1684
  %v1717 = vmax.f32 %v1612, %v1685
  %v1718 = vmax.f32 %v1617, %v1686
  %v1719 = vmax.f32 %v1619, %v1687
  %v1720 = vmax.f32 %v1624, %v1688
  %v1721 = vmax.f32 %v1626, %v1689
  %v1722 = vmax.f32 %v1631, %v1690
  %v1723 = vmax.f32 %v1633, %v1691
  %v1724 = vmax.f32 %v1638, %v1692
  %v1725 = vmax.f32 %v1640, %v1693
  %v1726 = vmax.f32 %v1645, %v1694
  %v1727 = vmax.f32 %v1647, %v1695
  %v1728 = vmax.f32 %v1652, %v1696
  %v1729 = vmax.f32 %v1654, %v1697
  %v1730 = vmax.f32 %v1659, %v1698
  %v1731 = vmax.f32 %v1661, %v1699
  %v1732 = vmax.f32 %v1666, %v1700
  %v1733 = vmax.f32 %v1668, %v1701
  %v1734 = vld [vmem:[%s3] sm:$0xff]
  %v1735 = vld [vmem:[%s3 + $0x8] sm:$0xff]
  %v1736 = vld [vmem:[%s3 + $0x10] sm:$0xff]
  %v1737 = vld [vmem:[%s3 + $0x18] sm:$0xff]
  %v1738 = vld [vmem:[%s3 + $0x20] sm:$0xff]
  %v1739 = vld [vmem:[%s3 + $0x28] sm:$0xff]
  %v1740 = vld [vmem:[%s4] sm:$0xff]
  %v1741 = vld [vmem:[%s4 + $0x8] sm:$0xff]
  %v1742 = vld [vmem:[%s4 + $0x10] sm:$0xff]
  %1744 = vset.pattern.permute.xlu0 0
  %1745 = vperm.xlu0 %1744, %v1740
  %v1746 = vpop.permute.xlu0 %1745
  %1749 = vset.pattern.permute.xlu0 0
  %1750 = vperm.xlu0 %1749, %v1741
  %v1751 = vpop.permute.xlu0 %1750
  %1754 = vset.pattern.permute.xlu0 0
  %1755 = vperm.xlu0 %1754, %v1742
  %v1756 = vpop.permute.xlu0 %1755
  %v1758 = vand.u32 %v1733, 4294901760
  %1759 = vmatprep.subr.mxu0 %v1758
  %v1760 = vand.u32 %v1732, 4294901760
  %1761 = vmatpush1.xpose.msra.mxu0 %v1760
  %v1762 = vand.u32 %v1731, 4294901760
  %1763 = vmatprep.subr.mxu0 %v1762
  %v1764 = vand.u32 %v1730, 4294901760
  %1765 = vmatpush1.xpose.msra.mxu0 %v1764
  %v1766 = vand.u32 %v1729, 4294901760
  %1767 = vmatprep.subr.mxu0 %v1766
  %v1768 = vand.u32 %v1728, 4294901760
  %1769 = vmatpush1.xpose.msra.mxu0 %v1768
  %v1770 = vand.u32 %v1727, 4294901760
  %1771 = vmatprep.subr.mxu0 %v1770
  %v1772 = vand.u32 %v1726, 4294901760
  %1773 = vmatpush1.xpose.msra.mxu0 %v1772
  %v1774 = vand.u32 %v1725, 4294901760
  %1775 = vmatprep.subr.mxu0 %v1774
  %v1776 = vand.u32 %v1724, 4294901760
  %1777 = vmatpush1.xpose.msra.mxu0 %v1776
  %v1778 = vand.u32 %v1723, 4294901760
  %1779 = vmatprep.subr.mxu0 %v1778
  %v1780 = vand.u32 %v1722, 4294901760
  %1781 = vmatpush1.xpose.msra.mxu0 %v1780
  %v1782 = vand.u32 %v1721, 4294901760
  %1783 = vmatprep.subr.mxu0 %v1782
  %v1784 = vand.u32 %v1720, 4294901760
  %1785 = vmatpush1.xpose.msra.mxu0 %v1784
  %v1786 = vand.u32 %v1719, 4294901760
  %1787 = vmatprep.subr.mxu0 %v1786
  %v1788 = vand.u32 %v1718, 4294901760
  %1789 = vmatpush1.xpose.msra.mxu0 %v1788
  %v1790 = vand.u32 %v1717, 4294901760
  %1791 = vmatprep.subr.mxu0 %v1790
  %v1792 = vand.u32 %v1716, 4294901760
  %1793 = vmatpush1.xpose.msra.mxu0 %v1792
  %v1794 = vand.u32 %v1715, 4294901760
  %1795 = vmatprep.subr.mxu0 %v1794
  %v1796 = vand.u32 %v1714, 4294901760
  %1797 = vmatpush1.xpose.msra.mxu0 %v1796
  %v1798 = vand.u32 %v1713, 4294901760
  %1799 = vmatprep.subr.mxu0 %v1798
  %v1800 = vand.u32 %v1712, 4294901760
  %1801 = vmatpush1.xpose.msra.mxu0 %v1800
  %v1802 = vand.u32 %v1711, 4294901760
  %1803 = vmatprep.subr.mxu0 %v1802
  %v1804 = vand.u32 %v1710, 4294901760
  %1805 = vmatpush1.xpose.msra.mxu0 %v1804
  %v1806 = vand.u32 %v1709, 4294901760
  %1807 = vmatprep.subr.mxu0 %v1806
  %v1808 = vand.u32 %v1708, 4294901760
  %1809 = vmatpush1.xpose.msra.mxu0 %v1808
  %v1810 = vand.u32 %v1707, 4294901760
  %1811 = vmatprep.subr.mxu0 %v1810
  %v1812 = vand.u32 %v1706, 4294901760
  %1813 = vmatpush1.xpose.msra.mxu0 %v1812
  %v1814 = vand.u32 %v1705, 4294901760
  %1815 = vmatprep.subr.mxu0 %v1814
  %v1816 = vand.u32 %v1704, 4294901760
  %1817 = vmatpush1.xpose.msra.mxu0 %v1816
  %v1818 = vand.u32 %v1703, 4294901760
  %1819 = vmatprep.subr.mxu0 %v1818
  %v1820 = vand.u32 %v1702, 4294901760
  %1821 = vmatpush1.xpose.msra.mxu0 %v1820
  %1822 = vmatprep.subr.mxu0 0.0
  %1823 = vmatpush2.xpose.msra.mxu0 0.0
  %1824 = vmatprep.subr.mxu0 0.0
  %1825 = vmatpush2.xpose.msra.mxu0 0.0
  %1826 = vmatprep.subr.mxu0 0.0
  %1827 = vmatpush2.xpose.msra.mxu0 0.0
  %1828 = vmatprep.subr.mxu0 0.0
  %1829 = vmatpush2.xpose.msra.mxu0 0.0
  %1830 = vmatprep.subr.mxu0 0.0
  %1831 = vmatpush2.xpose.msra.mxu0 0.0
  %1832 = vmatprep.subr.mxu0 0.0
  %1833 = vmatpush2.xpose.msra.mxu0 0.0
  %1834 = vmatprep.subr.mxu0 0.0
  %1835 = vmatpush2.xpose.msra.mxu0 0.0
  %1836 = vmatprep.subr.mxu0 0.0
  %1837 = vmatpush2.xpose.msra.mxu0 0.0
  %1838 = vmatprep.subr.mxu0 0.0
  %1839 = vmatpush2.xpose.msra.mxu0 0.0
  %1840 = vmatprep.subr.mxu0 0.0
  %1841 = vmatpush2.xpose.msra.mxu0 0.0
  %1842 = vmatprep.subr.mxu0 0.0
  %1843 = vmatpush2.xpose.msra.mxu0 0.0
  %1844 = vmatprep.subr.mxu0 0.0
  %1845 = vmatpush2.xpose.msra.mxu0 0.0
  %1846 = vmatprep.subr.mxu0 0.0
  %1847 = vmatpush2.xpose.msra.mxu0 0.0
  %1848 = vmatprep.subr.mxu0 0.0
  %1849 = vmatpush2.xpose.msra.mxu0 0.0
  %1850 = vmatprep.subr.mxu0 0.0
  %1851 = vmatpush2.xpose.msra.mxu0 0.0
  %1852 = vmatprep.subr.mxu0 0.0
  %1853 = vmatpush2.xpose.msra.mxu0 0.0
  %v1854 = vand.u32 %v1735, 4294901760
  %v1855 = vsub.f32 %v1735, %v1854
  %v1856 = vand.u32 %v1855, 4294901760
  %v1857 = vsub.f32 %v1855, %v1856
  %v1858 = vand.u32 %v1857, 4294901760
  %1859 = vmatprep.mubr.f32.mxu0 %v1858
  %v1860 = vand.u32 %v1734, 4294901760
  %v1861 = vsub.f32 %v1734, %v1860
  %v1862 = vand.u32 %v1861, 4294901760
  %v1863 = vsub.f32 %v1861, %v1862
  %v1864 = vand.u32 %v1863, 4294901760
  %1865 = vmatmul.mubr.f32.gmra.mxu0 %v1864
  %v1866 = vpop.f32.mrf.mxu0
  %v1867 = vadd.f32 %v1746, %v1866
  %v1868 = vpop.f32.mrf.mxu0
  %v1869 = vand.u32 %v1737, 4294901760
  %v1870 = vsub.f32 %v1737, %v1869
  %v1871 = vand.u32 %v1870, 4294901760
  %v1872 = vsub.f32 %v1870, %v1871
  %v1873 = vand.u32 %v1872, 4294901760
  %1874 = vmatprep.mubr.f32.mxu0 %v1873
  %v1875 = vand.u32 %v1736, 4294901760
  %v1876 = vsub.f32 %v1736, %v1875
  %v1877 = vand.u32 %v1876, 4294901760
  %v1878 = vsub.f32 %v1876, %v1877
  %v1879 = vand.u32 %v1878, 4294901760
  %1880 = vmatmul.mubr.f32.gmra.mxu0 %v1879
  %v1881 = vpop.f32.mrf.mxu0
  %v1882 = vadd.f32 %v1751, %v1881
  %v1883 = vpop.f32.mrf.mxu0
  %v1884 = vand.u32 %v1739, 4294901760
  %v1885 = vsub.f32 %v1739, %v1884
  %v1886 = vand.u32 %v1885, 4294901760
  %v1887 = vsub.f32 %v1885, %v1886
  %v1888 = vand.u32 %v1887, 4294901760
  %1889 = vmatprep.mubr.f32.mxu0 %v1888
  %v1890 = vand.u32 %v1738, 4294901760
  %v1891 = vsub.f32 %v1738, %v1890
  %v1892 = vand.u32 %v1891, 4294901760
  %v1893 = vsub.f32 %v1891, %v1892
  %v1894 = vand.u32 %v1893, 4294901760
  %1895 = vmatmul.mubr.f32.gmra.mxu0 %v1894
  %v1896 = vpop.f32.mrf.mxu0
  %v1897 = vadd.f32 %v1756, %v1896
  %v1898 = vpop.f32.mrf.mxu0
  %1899 = vdwg.mxu0
  %v1900 = vand.u32 %v1733, 4294901760
  %v1901 = vsub.f32 %v1733, %v1900
  %v1902 = vand.u32 %v1901, 4294901760
  %v1903 = vsub.f32 %v1901, %v1902
  %v1904 = vand.u32 %v1903, 4294901760
  %1905 = vmatprep.subr.mxu0 %v1904
  %v1906 = vand.u32 %v1732, 4294901760
  %v1907 = vsub.f32 %v1732, %v1906
  %v1908 = vand.u32 %v1907, 4294901760
  %v1909 = vsub.f32 %v1907, %v1908
  %v1910 = vand.u32 %v1909, 4294901760
  %1911 = vmatpush1.xpose.msra.mxu0 %v1910
  %v1912 = vand.u32 %v1731, 4294901760
  %v1913 = vsub.f32 %v1731, %v1912
  %v1914 = vand.u32 %v1913, 4294901760
  %v1915 = vsub.f32 %v1913, %v1914
  %v1916 = vand.u32 %v1915, 4294901760
  %1917 = vmatprep.subr.mxu0 %v1916
  %v1918 = vand.u32 %v1730, 4294901760
  %v1919 = vsub.f32 %v1730, %v1918
  %v1920 = vand.u32 %v1919, 4294901760
  %v1921 = vsub.f32 %v1919, %v1920
  %v1922 = vand.u32 %v1921, 4294901760
  %1923 = vmatpush1.xpose.msra.mxu0 %v1922
  %v1924 = vand.u32 %v1729, 4294901760
  %v1925 = vsub.f32 %v1729, %v1924
  %v1926 = vand.u32 %v1925, 4294901760
  %v1927 = vsub.f32 %v1925, %v1926
  %v1928 = vand.u32 %v1927, 4294901760
  %1929 = vmatprep.subr.mxu0 %v1928
  %v1930 = vand.u32 %v1728, 4294901760
  %v1931 = vsub.f32 %v1728, %v1930
  %v1932 = vand.u32 %v1931, 4294901760
  %v1933 = vsub.f32 %v1931, %v1932
  %v1934 = vand.u32 %v1933, 4294901760
  %1935 = vmatpush1.xpose.msra.mxu0 %v1934
  %v1936 = vand.u32 %v1727, 4294901760
  %v1937 = vsub.f32 %v1727, %v1936
  %v1938 = vand.u32 %v1937, 4294901760
  %v1939 = vsub.f32 %v1937, %v1938
  %v1940 = vand.u32 %v1939, 4294901760
  %1941 = vmatprep.subr.mxu0 %v1940
  %v1942 = vand.u32 %v1726, 4294901760
  %v1943 = vsub.f32 %v1726, %v1942
  %v1944 = vand.u32 %v1943, 4294901760
  %v1945 = vsub.f32 %v1943, %v1944
  %v1946 = vand.u32 %v1945, 4294901760
  %1947 = vmatpush1.xpose.msra.mxu0 %v1946
  %v1948 = vand.u32 %v1725, 4294901760
  %v1949 = vsub.f32 %v1725, %v1948
  %v1950 = vand.u32 %v1949, 4294901760
  %v1951 = vsub.f32 %v1949, %v1950
  %v1952 = vand.u32 %v1951, 4294901760
  %1953 = vmatprep.subr.mxu0 %v1952
  %v1954 = vand.u32 %v1724, 4294901760
  %v1955 = vsub.f32 %v1724, %v1954
  %v1956 = vand.u32 %v1955, 4294901760
  %v1957 = vsub.f32 %v1955, %v1956
  %v1958 = vand.u32 %v1957, 4294901760
  %1959 = vmatpush1.xpose.msra.mxu0 %v1958
  %v1960 = vand.u32 %v1723, 4294901760
  %v1961 = vsub.f32 %v1723, %v1960
  %v1962 = vand.u32 %v1961, 4294901760
  %v1963 = vsub.f32 %v1961, %v1962
  %v1964 = vand.u32 %v1963, 4294901760
  %1965 = vmatprep.subr.mxu0 %v1964
  %v1966 = vand.u32 %v1722, 4294901760
  %v1967 = vsub.f32 %v1722, %v1966
  %v1968 = vand.u32 %v1967, 4294901760
  %v1969 = vsub.f32 %v1967, %v1968
  %v1970 = vand.u32 %v1969, 4294901760
  %1971 = vmatpush1.xpose.msra.mxu0 %v1970
  %v1972 = vand.u32 %v1721, 4294901760
  %v1973 = vsub.f32 %v1721, %v1972
  %v1974 = vand.u32 %v1973, 4294901760
  %v1975 = vsub.f32 %v1973, %v1974
  %v1976 = vand.u32 %v1975, 4294901760
  %1977 = vmatprep.subr.mxu0 %v1976
  %v1978 = vand.u32 %v1720, 4294901760
  %v1979 = vsub.f32 %v1720, %v1978
  %v1980 = vand.u32 %v1979, 4294901760
  %v1981 = vsub.f32 %v1979, %v1980
  %v1982 = vand.u32 %v1981, 4294901760
  %1983 = vmatpush1.xpose.msra.mxu0 %v1982
  %v1984 = vand.u32 %v1719, 4294901760
  %v1985 = vsub.f32 %v1719, %v1984
  %v1986 = vand.u32 %v1985, 4294901760
  %v1987 = vsub.f32 %v1985, %v1986
  %v1988 = vand.u32 %v1987, 4294901760
  %1989 = vmatprep.subr.mxu0 %v1988
  %v1990 = vand.u32 %v1718, 4294901760
  %v1991 = vsub.f32 %v1718, %v1990
  %v1992 = vand.u32 %v1991, 4294901760
  %v1993 = vsub.f32 %v1991, %v1992
  %v1994 = vand.u32 %v1993, 4294901760
  %1995 = vmatpush1.xpose.msra.mxu0 %v1994
  %v1996 = vand.u32 %v1717, 4294901760
  %v1997 = vsub.f32 %v1717, %v1996
  %v1998 = vand.u32 %v1997, 4294901760
  %v1999 = vsub.f32 %v1997, %v1998
  %v2000 = vand.u32 %v1999, 4294901760
  %2001 = vmatprep.subr.mxu0 %v2000
  %v2002 = vand.u32 %v1716, 4294901760
  %v2003 = vsub.f32 %v1716, %v2002
  %v2004 = vand.u32 %v2003, 4294901760
  %v2005 = vsub.f32 %v2003, %v2004
  %v2006 = vand.u32 %v2005, 4294901760
  %2007 = vmatpush1.xpose.msra.mxu0 %v2006
  %v2008 = vand.u32 %v1715, 4294901760
  %v2009 = vsub.f32 %v1715, %v2008
  %v2010 = vand.u32 %v2009, 4294901760
  %v2011 = vsub.f32 %v2009, %v2010
  %v2012 = vand.u32 %v2011, 4294901760
  %2013 = vmatprep.subr.mxu0 %v2012
  %v2014 = vand.u32 %v1714, 4294901760
  %v2015 = vsub.f32 %v1714, %v2014
  %v2016 = vand.u32 %v2015, 4294901760
  %v2017 = vsub.f32 %v2015, %v2016
  %v2018 = vand.u32 %v2017, 4294901760
  %2019 = vmatpush1.xpose.msra.mxu0 %v2018
  %v2020 = vand.u32 %v1713, 4294901760
  %v2021 = vsub.f32 %v1713, %v2020
  %v2022 = vand.u32 %v2021, 4294901760
  %v2023 = vsub.f32 %v2021, %v2022
  %v2024 = vand.u32 %v2023, 4294901760
  %2025 = vmatprep.subr.mxu0 %v2024
  %v2026 = vand.u32 %v1712, 4294901760
  %v2027 = vsub.f32 %v1712, %v2026
  %v2028 = vand.u32 %v2027, 4294901760
  %v2029 = vsub.f32 %v2027, %v2028
  %v2030 = vand.u32 %v2029, 4294901760
  %2031 = vmatpush1.xpose.msra.mxu0 %v2030
  %v2032 = vand.u32 %v1711, 4294901760
  %v2033 = vsub.f32 %v1711, %v2032
  %v2034 = vand.u32 %v2033, 4294901760
  %v2035 = vsub.f32 %v2033, %v2034
  %v2036 = vand.u32 %v2035, 4294901760
  %2037 = vmatprep.subr.mxu0 %v2036
  %v2038 = vand.u32 %v1710, 4294901760
  %v2039 = vsub.f32 %v1710, %v2038
  %v2040 = vand.u32 %v2039, 4294901760
  %v2041 = vsub.f32 %v2039, %v2040
  %v2042 = vand.u32 %v2041, 4294901760
  %2043 = vmatpush1.xpose.msra.mxu0 %v2042
  %v2044 = vand.u32 %v1709, 4294901760
  %v2045 = vsub.f32 %v1709, %v2044
  %v2046 = vand.u32 %v2045, 4294901760
  %v2047 = vsub.f32 %v2045, %v2046
  %v2048 = vand.u32 %v2047, 4294901760
  %2049 = vmatprep.subr.mxu0 %v2048
  %v2050 = vand.u32 %v1708, 4294901760
  %v2051 = vsub.f32 %v1708, %v2050
  %v2052 = vand.u32 %v2051, 4294901760
  %v2053 = vsub.f32 %v2051, %v2052
  %v2054 = vand.u32 %v2053, 4294901760
  %2055 = vmatpush1.xpose.msra.mxu0 %v2054
  %v2056 = vand.u32 %v1707, 4294901760
  %v2057 = vsub.f32 %v1707, %v2056
  %v2058 = vand.u32 %v2057, 4294901760
  %v2059 = vsub.f32 %v2057, %v2058
  %v2060 = vand.u32 %v2059, 4294901760
  %2061 = vmatprep.subr.mxu0 %v2060
  %v2062 = vand.u32 %v1706, 4294901760
  %v2063 = vsub.f32 %v1706, %v2062
  %v2064 = vand.u32 %v2063, 4294901760
  %v2065 = vsub.f32 %v2063, %v2064
  %v2066 = vand.u32 %v2065, 4294901760
  %2067 = vmatpush1.xpose.msra.mxu0 %v2066
  %v2068 = vand.u32 %v1705, 4294901760
  %v2069 = vsub.f32 %v1705, %v2068
  %v2070 = vand.u32 %v2069, 4294901760
  %v2071 = vsub.f32 %v2069, %v2070
  %v2072 = vand.u32 %v2071, 4294901760
  %2073 = vmatprep.subr.mxu0 %v2072
  %v2074 = vand.u32 %v1704, 4294901760
  %v2075 = vsub.f32 %v1704, %v2074
  %v2076 = vand.u32 %v2075, 4294901760
  %v2077 = vsub.f32 %v2075, %v2076
  %v2078 = vand.u32 %v2077, 4294901760
  %2079 = vmatpush1.xpose.msra.mxu0 %v2078
  %v2080 = vand.u32 %v1703, 4294901760
  %v2081 = vsub.f32 %v1703, %v2080
  %v2082 = vand.u32 %v2081, 4294901760
  %v2083 = vsub.f32 %v2081, %v2082
  %v2084 = vand.u32 %v2083, 4294901760
  %2085 = vmatprep.subr.mxu0 %v2084
  %v2086 = vand.u32 %v1702, 4294901760
  %v2087 = vsub.f32 %v1702, %v2086
  %v2088 = vand.u32 %v2087, 4294901760
  %v2089 = vsub.f32 %v2087, %v2088
  %v2090 = vand.u32 %v2089, 4294901760
  %2091 = vmatpush1.xpose.msra.mxu0 %v2090
  %2092 = vmatprep.subr.mxu0 0.0
  %2093 = vmatpush2.xpose.msra.mxu0 0.0
  %2094 = vmatprep.subr.mxu0 0.0
  %2095 = vmatpush2.xpose.msra.mxu0 0.0
  %2096 = vmatprep.subr.mxu0 0.0
  %2097 = vmatpush2.xpose.msra.mxu0 0.0
  %2098 = vmatprep.subr.mxu0 0.0
  %2099 = vmatpush2.xpose.msra.mxu0 0.0
  %2100 = vmatprep.subr.mxu0 0.0
  %2101 = vmatpush2.xpose.msra.mxu0 0.0
  %2102 = vmatprep.subr.mxu0 0.0
  %2103 = vmatpush2.xpose.msra.mxu0 0.0
  %2104 = vmatprep.subr.mxu0 0.0
  %2105 = vmatpush2.xpose.msra.mxu0 0.0
  %2106 = vmatprep.subr.mxu0 0.0
  %2107 = vmatpush2.xpose.msra.mxu0 0.0
  %2108 = vmatprep.subr.mxu0 0.0
  %2109 = vmatpush2.xpose.msra.mxu0 0.0
  %2110 = vmatprep.subr.mxu0 0.0
  %2111 = vmatpush2.xpose.msra.mxu0 0.0
  %2112 = vmatprep.subr.mxu0 0.0
  %2113 = vmatpush2.xpose.msra.mxu0 0.0
  %2114 = vmatprep.subr.mxu0 0.0
  %2115 = vmatpush2.xpose.msra.mxu0 0.0
  %2116 = vmatprep.subr.mxu0 0.0
  %2117 = vmatpush2.xpose.msra.mxu0 0.0
  %2118 = vmatprep.subr.mxu0 0.0
  %2119 = vmatpush2.xpose.msra.mxu0 0.0
  %2120 = vmatprep.subr.mxu0 0.0
  %2121 = vmatpush2.xpose.msra.mxu0 0.0
  %2122 = vmatprep.subr.mxu0 0.0
  %2123 = vmatpush2.xpose.msra.mxu0 0.0
  %v2124 = vand.u32 %v1735, 4294901760
  %2125 = vmatprep.mubr.f32.mxu0 %v2124
  %v2126 = vand.u32 %v1734, 4294901760
  %2127 = vmatmul.mubr.f32.gmra.mxu0 %v2126
  %v2128 = vpop.f32.mrf.mxu0
  %v2129 = vadd.f32 %v1867, %v2128
  %v2130 = vpop.f32.mrf.mxu0
  %v2131 = vand.u32 %v1737, 4294901760
  %2132 = vmatprep.mubr.f32.mxu0 %v2131
  %v2133 = vand.u32 %v1736, 4294901760
  %2134 = vmatmul.mubr.f32.gmra.mxu0 %v2133
  %v2135 = vpop.f32.mrf.mxu0
  %v2136 = vadd.f32 %v1882, %v2135
  %v2137 = vpop.f32.mrf.mxu0
  %v2138 = vand.u32 %v1739, 4294901760
  %2139 = vmatprep.mubr.f32.mxu0 %v2138
  %v2140 = vand.u32 %v1738, 4294901760
  %2141 = vmatmul.mubr.f32.gmra.mxu0 %v2140
  %v2142 = vpop.f32.mrf.mxu0
  %v2143 = vadd.f32 %v1897, %v2142
  %v2144 = vpop.f32.mrf.mxu0
  %2145 = vdwg.mxu0
  %v2146 = vand.u32 %v1733, 4294901760
  %v2147 = vsub.f32 %v1733, %v2146
  %2148 = vmatprep.subr.mxu0 %v2147
  %v2149 = vand.u32 %v1732, 4294901760
  %v2150 = vsub.f32 %v1732, %v2149
  %2151 = vmatpush1.xpose.msra.mxu0 %v2150
  %v2152 = vand.u32 %v1731, 4294901760
  %v2153 = vsub.f32 %v1731, %v2152
  %2154 = vmatprep.subr.mxu0 %v2153
  %v2155 = vand.u32 %v1730, 4294901760
  %v2156 = vsub.f32 %v1730, %v2155
  %2157 = vmatpush1.xpose.msra.mxu0 %v2156
  %v2158 = vand.u32 %v1729, 4294901760
  %v2159 = vsub.f32 %v1729, %v2158
  %2160 = vmatprep.subr.mxu0 %v2159
  %v2161 = vand.u32 %v1728, 4294901760
  %v2162 = vsub.f32 %v1728, %v2161
  %2163 = vmatpush1.xpose.msra.mxu0 %v2162
  %v2164 = vand.u32 %v1727, 4294901760
  %v2165 = vsub.f32 %v1727, %v2164
  %2166 = vmatprep.subr.mxu0 %v2165
  %v2167 = vand.u32 %v1726, 4294901760
  %v2168 = vsub.f32 %v1726, %v2167
  %2169 = vmatpush1.xpose.msra.mxu0 %v2168
  %v2170 = vand.u32 %v1725, 4294901760
  %v2171 = vsub.f32 %v1725, %v2170
  %2172 = vmatprep.subr.mxu0 %v2171
  %v2173 = vand.u32 %v1724, 4294901760
  %v2174 = vsub.f32 %v1724, %v2173
  %2175 = vmatpush1.xpose.msra.mxu0 %v2174
  %v2176 = vand.u32 %v1723, 4294901760
  %v2177 = vsub.f32 %v1723, %v2176
  %2178 = vmatprep.subr.mxu0 %v2177
  %v2179 = vand.u32 %v1722, 4294901760
  %v2180 = vsub.f32 %v1722, %v2179
  %2181 = vmatpush1.xpose.msra.mxu0 %v2180
  %v2182 = vand.u32 %v1721, 4294901760
  %v2183 = vsub.f32 %v1721, %v2182
  %2184 = vmatprep.subr.mxu0 %v2183
  %v2185 = vand.u32 %v1720, 4294901760
  %v2186 = vsub.f32 %v1720, %v2185
  %2187 = vmatpush1.xpose.msra.mxu0 %v2186
  %v2188 = vand.u32 %v1719, 4294901760
  %v2189 = vsub.f32 %v1719, %v2188
  %2190 = vmatprep.subr.mxu0 %v2189
  %v2191 = vand.u32 %v1718, 4294901760
  %v2192 = vsub.f32 %v1718, %v2191
  %2193 = vmatpush1.xpose.msra.mxu0 %v2192
  %v2194 = vand.u32 %v1717, 4294901760
  %v2195 = vsub.f32 %v1717, %v2194
  %2196 = vmatprep.subr.mxu0 %v2195
  %v2197 = vand.u32 %v1716, 4294901760
  %v2198 = vsub.f32 %v1716, %v2197
  %2199 = vmatpush1.xpose.msra.mxu0 %v2198
  %v2200 = vand.u32 %v1715, 4294901760
  %v2201 = vsub.f32 %v1715, %v2200
  %2202 = vmatprep.subr.mxu0 %v2201
  %v2203 = vand.u32 %v1714, 4294901760
  %v2204 = vsub.f32 %v1714, %v2203
  %2205 = vmatpush1.xpose.msra.mxu0 %v2204
  %v2206 = vand.u32 %v1713, 4294901760
  %v2207 = vsub.f32 %v1713, %v2206
  %2208 = vmatprep.subr.mxu0 %v2207
  %v2209 = vand.u32 %v1712, 4294901760
  %v2210 = vsub.f32 %v1712, %v2209
  %2211 = vmatpush1.xpose.msra.mxu0 %v2210
  %v2212 = vand.u32 %v1711, 4294901760
  %v2213 = vsub.f32 %v1711, %v2212
  %2214 = vmatprep.subr.mxu0 %v2213
  %v2215 = vand.u32 %v1710, 4294901760
  %v2216 = vsub.f32 %v1710, %v2215
  %2217 = vmatpush1.xpose.msra.mxu0 %v2216
  %v2218 = vand.u32 %v1709, 4294901760
  %v2219 = vsub.f32 %v1709, %v2218
  %2220 = vmatprep.subr.mxu0 %v2219
  %v2221 = vand.u32 %v1708, 4294901760
  %v2222 = vsub.f32 %v1708, %v2221
  %2223 = vmatpush1.xpose.msra.mxu0 %v2222
  %v2224 = vand.u32 %v1707, 4294901760
  %v2225 = vsub.f32 %v1707, %v2224
  %2226 = vmatprep.subr.mxu0 %v2225
  %v2227 = vand.u32 %v1706, 4294901760
  %v2228 = vsub.f32 %v1706, %v2227
  %2229 = vmatpush1.xpose.msra.mxu0 %v2228
  %v2230 = vand.u32 %v1705, 4294901760
  %v2231 = vsub.f32 %v1705, %v2230
  %2232 = vmatprep.subr.mxu0 %v2231
  %v2233 = vand.u32 %v1704, 4294901760
  %v2234 = vsub.f32 %v1704, %v2233
  %2235 = vmatpush1.xpose.msra.mxu0 %v2234
  %v2236 = vand.u32 %v1703, 4294901760
  %v2237 = vsub.f32 %v1703, %v2236
  %2238 = vmatprep.subr.mxu0 %v2237
  %v2239 = vand.u32 %v1702, 4294901760
  %v2240 = vsub.f32 %v1702, %v2239
  %2241 = vmatpush1.xpose.msra.mxu0 %v2240
  %2242 = vmatprep.subr.mxu0 0.0
  %2243 = vmatpush2.xpose.msra.mxu0 0.0
  %2244 = vmatprep.subr.mxu0 0.0
  %2245 = vmatpush2.xpose.msra.mxu0 0.0
  %2246 = vmatprep.subr.mxu0 0.0
  %2247 = vmatpush2.xpose.msra.mxu0 0.0
  %2248 = vmatprep.subr.mxu0 0.0
  %2249 = vmatpush2.xpose.msra.mxu0 0.0
  %2250 = vmatprep.subr.mxu0 0.0
  %2251 = vmatpush2.xpose.msra.mxu0 0.0
  %2252 = vmatprep.subr.mxu0 0.0
  %2253 = vmatpush2.xpose.msra.mxu0 0.0
  %2254 = vmatprep.subr.mxu0 0.0
  %2255 = vmatpush2.xpose.msra.mxu0 0.0
  %2256 = vmatprep.subr.mxu0 0.0
  %2257 = vmatpush2.xpose.msra.mxu0 0.0
  %2258 = vmatprep.subr.mxu0 0.0
  %2259 = vmatpush2.xpose.msra.mxu0 0.0
  %2260 = vmatprep.subr.mxu0 0.0
  %2261 = vmatpush2.xpose.msra.mxu0 0.0
  %2262 = vmatprep.subr.mxu0 0.0
  %2263 = vmatpush2.xpose.msra.mxu0 0.0
  %2264 = vmatprep.subr.mxu0 0.0
  %2265 = vmatpush2.xpose.msra.mxu0 0.0
  %2266 = vmatprep.subr.mxu0 0.0
  %2267 = vmatpush2.xpose.msra.mxu0 0.0
  %2268 = vmatprep.subr.mxu0 0.0
  %2269 = vmatpush2.xpose.msra.mxu0 0.0
  %2270 = vmatprep.subr.mxu0 0.0
  %2271 = vmatpush2.xpose.msra.mxu0 0.0
  %2272 = vmatprep.subr.mxu0 0.0
  %2273 = vmatpush2.xpose.msra.mxu0 0.0
  %v2274 = vand.u32 %v1735, 4294901760
  %v2275 = vsub.f32 %v1735, %v2274
  %2276 = vmatprep.mubr.f32.mxu0 %v2275
  %v2277 = vand.u32 %v1734, 4294901760
  %v2278 = vsub.f32 %v1734, %v2277
  %2279 = vmatmul.mubr.f32.gmra.mxu0 %v2278
  %v2280 = vpop.f32.mrf.mxu0
  %v2281 = vadd.f32 %v2129, %v2280
  %v2282 = vpop.f32.mrf.mxu0
  %v2283 = vand.u32 %v1737, 4294901760
  %v2284 = vsub.f32 %v1737, %v2283
  %2285 = vmatprep.mubr.f32.mxu0 %v2284
  %v2286 = vand.u32 %v1736, 4294901760
  %v2287 = vsub.f32 %v1736, %v2286
  %2288 = vmatmul.mubr.f32.gmra.mxu0 %v2287
  %v2289 = vpop.f32.mrf.mxu0
  %v2290 = vadd.f32 %v2136, %v2289
  %v2291 = vpop.f32.mrf.mxu0
  %v2292 = vand.u32 %v1739, 4294901760
  %v2293 = vsub.f32 %v1739, %v2292
  %2294 = vmatprep.mubr.f32.mxu0 %v2293
  %v2295 = vand.u32 %v1738, 4294901760
  %v2296 = vsub.f32 %v1738, %v2295
  %2297 = vmatmul.mubr.f32.gmra.mxu0 %v2296
  %v2298 = vpop.f32.mrf.mxu0
  %v2299 = vadd.f32 %v2143, %v2298
  %v2300 = vpop.f32.mrf.mxu0
  %2301 = vdwg.mxu0
  %v2302 = vand.u32 %v1733, 4294901760
  %2303 = vmatprep.subr.mxu0 %v2302
  %v2304 = vand.u32 %v1732, 4294901760
  %2305 = vmatpush1.xpose.msra.mxu0 %v2304
  %v2306 = vand.u32 %v1731, 4294901760
  %2307 = vmatprep.subr.mxu0 %v2306
  %v2308 = vand.u32 %v1730, 4294901760
  %2309 = vmatpush1.xpose.msra.mxu0 %v2308
  %v2310 = vand.u32 %v1729, 4294901760
  %2311 = vmatprep.subr.mxu0 %v2310
  %v2312 = vand.u32 %v1728, 4294901760
  %2313 = vmatpush1.xpose.msra.mxu0 %v2312
  %v2314 = vand.u32 %v1727, 4294901760
  %2315 = vmatprep.subr.mxu0 %v2314
  %v2316 = vand.u32 %v1726, 4294901760
  %2317 = vmatpush1.xpose.msra.mxu0 %v2316
  %v2318 = vand.u32 %v1725, 4294901760
  %2319 = vmatprep.subr.mxu0 %v2318
  %v2320 = vand.u32 %v1724, 4294901760
  %2321 = vmatpush1.xpose.msra.mxu0 %v2320
  %v2322 = vand.u32 %v1723, 4294901760
  %2323 = vmatprep.subr.mxu0 %v2322
  %v2324 = vand.u32 %v1722, 4294901760
  %2325 = vmatpush1.xpose.msra.mxu0 %v2324
  %v2326 = vand.u32 %v1721, 4294901760
  %2327 = vmatprep.subr.mxu0 %v2326
  %v2328 = vand.u32 %v1720, 4294901760
  %2329 = vmatpush1.xpose.msra.mxu0 %v2328
  %v2330 = vand.u32 %v1719, 4294901760
  %2331 = vmatprep.subr.mxu0 %v2330
  %v2332 = vand.u32 %v1718, 4294901760
  %2333 = vmatpush1.xpose.msra.mxu0 %v2332
  %v2334 = vand.u32 %v1717, 4294901760
  %2335 = vmatprep.subr.mxu0 %v2334
  %v2336 = vand.u32 %v1716, 4294901760
  %2337 = vmatpush1.xpose.msra.mxu0 %v2336
  %v2338 = vand.u32 %v1715, 4294901760
  %2339 = vmatprep.subr.mxu0 %v2338
  %v2340 = vand.u32 %v1714, 4294901760
  %2341 = vmatpush1.xpose.msra.mxu0 %v2340
  %v2342 = vand.u32 %v1713, 4294901760
  %2343 = vmatprep.subr.mxu0 %v2342
  %v2344 = vand.u32 %v1712, 4294901760
  %2345 = vmatpush1.xpose.msra.mxu0 %v2344
  %v2346 = vand.u32 %v1711, 4294901760
  %2347 = vmatprep.subr.mxu0 %v2346
  %v2348 = vand.u32 %v1710, 4294901760
  %2349 = vmatpush1.xpose.msra.mxu0 %v2348
  %v2350 = vand.u32 %v1709, 4294901760
  %2351 = vmatprep.subr.mxu0 %v2350
  %v2352 = vand.u32 %v1708, 4294901760
  %2353 = vmatpush1.xpose.msra.mxu0 %v2352
  %v2354 = vand.u32 %v1707, 4294901760
  %2355 = vmatprep.subr.mxu0 %v2354
  %v2356 = vand.u32 %v1706, 4294901760
  %2357 = vmatpush1.xpose.msra.mxu0 %v2356
  %v2358 = vand.u32 %v1705, 4294901760
  %2359 = vmatprep.subr.mxu0 %v2358
  %v2360 = vand.u32 %v1704, 4294901760
  %2361 = vmatpush1.xpose.msra.mxu0 %v2360
  %v2362 = vand.u32 %v1703, 4294901760
  %2363 = vmatprep.subr.mxu0 %v2362
  %v2364 = vand.u32 %v1702, 4294901760
  %2365 = vmatpush1.xpose.msra.mxu0 %v2364
  %2366 = vmatprep.subr.mxu0 0.0
  %2367 = vmatpush2.xpose.msra.mxu0 0.0
  %2368 = vmatprep.subr.mxu0 0.0
  %2369 = vmatpush2.xpose.msra.mxu0 0.0
  %2370 = vmatprep.subr.mxu0 0.0
  %2371 = vmatpush2.xpose.msra.mxu0 0.0
  %2372 = vmatprep.subr.mxu0 0.0
  %2373 = vmatpush2.xpose.msra.mxu0 0.0
  %2374 = vmatprep.subr.mxu0 0.0
  %2375 = vmatpush2.xpose.msra.mxu0 0.0
  %2376 = vmatprep.subr.mxu0 0.0
  %2377 = vmatpush2.xpose.msra.mxu0 0.0
  %2378 = vmatprep.subr.mxu0 0.0
  %2379 = vmatpush2.xpose.msra.mxu0 0.0
  %2380 = vmatprep.subr.mxu0 0.0
  %2381 = vmatpush2.xpose.msra.mxu0 0.0
  %2382 = vmatprep.subr.mxu0 0.0
  %2383 = vmatpush2.xpose.msra.mxu0 0.0
  %2384 = vmatprep.subr.mxu0 0.0
  %2385 = vmatpush2.xpose.msra.mxu0 0.0
  %2386 = vmatprep.subr.mxu0 0.0
  %2387 = vmatpush2.xpose.msra.mxu0 0.0
  %2388 = vmatprep.subr.mxu0 0.0
  %2389 = vmatpush2.xpose.msra.mxu0 0.0
  %2390 = vmatprep.subr.mxu0 0.0
  %2391 = vmatpush2.xpose.msra.mxu0 0.0
  %2392 = vmatprep.subr.mxu0 0.0
  %2393 = vmatpush2.xpose.msra.mxu0 0.0
  %2394 = vmatprep.subr.mxu0 0.0
  %2395 = vmatpush2.xpose.msra.mxu0 0.0
  %2396 = vmatprep.subr.mxu0 0.0
  %2397 = vmatpush2.xpose.msra.mxu0 0.0
  %v2398 = vand.u32 %v1735, 4294901760
  %v2399 = vsub.f32 %v1735, %v2398
  %v2400 = vand.u32 %v2399, 4294901760
  %2401 = vmatprep.mubr.f32.mxu0 %v2400
  %v2402 = vand.u32 %v1734, 4294901760
  %v2403 = vsub.f32 %v1734, %v2402
  %v2404 = vand.u32 %v2403, 4294901760
  %2405 = vmatmul.mubr.f32.gmra.mxu0 %v2404
  %v2406 = vpop.f32.mrf.mxu0
  %v2407 = vadd.f32 %v2281, %v2406
  %v2408 = vpop.f32.mrf.mxu0
  %v2409 = vand.u32 %v1737, 4294901760
  %v2410 = vsub.f32 %v1737, %v2409
  %v2411 = vand.u32 %v2410, 4294901760
  %2412 = vmatprep.mubr.f32.mxu0 %v2411
  %v2413 = vand.u32 %v1736, 4294901760
  %v2414 = vsub.f32 %v1736, %v2413
  %v2415 = vand.u32 %v2414, 4294901760
  %2416 = vmatmul.mubr.f32.gmra.mxu0 %v2415
  %v2417 = vpop.f32.mrf.mxu0
  %v2418 = vadd.f32 %v2290, %v2417
  %v2419 = vpop.f32.mrf.mxu0
  %v2420 = vand.u32 %v1739, 4294901760
  %v2421 = vsub.f32 %v1739, %v2420
  %v2422 = vand.u32 %v2421, 4294901760
  %2423 = vmatprep.mubr.f32.mxu0 %v2422
  %v2424 = vand.u32 %v1738, 4294901760
  %v2425 = vsub.f32 %v1738, %v2424
  %v2426 = vand.u32 %v2425, 4294901760
  %2427 = vmatmul.mubr.f32.gmra.mxu0 %v2426
  %v2428 = vpop.f32.mrf.mxu0
  %v2429 = vadd.f32 %v2299, %v2428
  %v2430 = vpop.f32.mrf.mxu0
  %2431 = vdwg.mxu0
  %v2432 = vand.u32 %v1733, 4294901760
  %v2433 = vsub.f32 %v1733, %v2432
  %v2434 = vand.u32 %v2433, 4294901760
  %2435 = vmatprep.subr.mxu0 %v2434
  %v2436 = vand.u32 %v1732, 4294901760
  %v2437 = vsub.f32 %v1732, %v2436
  %v2438 = vand.u32 %v2437, 4294901760
  %2439 = vmatpush1.xpose.msra.mxu0 %v2438
  %v2440 = vand.u32 %v1731, 4294901760
  %v2441 = vsub.f32 %v1731, %v2440
  %v2442 = vand.u32 %v2441, 4294901760
  %2443 = vmatprep.subr.mxu0 %v2442
  %v2444 = vand.u32 %v1730, 4294901760
  %v2445 = vsub.f32 %v1730, %v2444
  %v2446 = vand.u32 %v2445, 4294901760
  %2447 = vmatpush1.xpose.msra.mxu0 %v2446
  %v2448 = vand.u32 %v1729, 4294901760
  %v2449 = vsub.f32 %v1729, %v2448
  %v2450 = vand.u32 %v2449, 4294901760
  %2451 = vmatprep.subr.mxu0 %v2450
  %v2452 = vand.u32 %v1728, 4294901760
  %v2453 = vsub.f32 %v1728, %v2452
  %v2454 = vand.u32 %v2453, 4294901760
  %2455 = vmatpush1.xpose.msra.mxu0 %v2454
  %v2456 = vand.u32 %v1727, 4294901760
  %v2457 = vsub.f32 %v1727, %v2456
  %v2458 = vand.u32 %v2457, 4294901760
  %2459 = vmatprep.subr.mxu0 %v2458
  %v2460 = vand.u32 %v1726, 4294901760
  %v2461 = vsub.f32 %v1726, %v2460
  %v2462 = vand.u32 %v2461, 4294901760
  %2463 = vmatpush1.xpose.msra.mxu0 %v2462
  %v2464 = vand.u32 %v1725, 4294901760
  %v2465 = vsub.f32 %v1725, %v2464
  %v2466 = vand.u32 %v2465, 4294901760
  %2467 = vmatprep.subr.mxu0 %v2466
  %v2468 = vand.u32 %v1724, 4294901760
  %v2469 = vsub.f32 %v1724, %v2468
  %v2470 = vand.u32 %v2469, 4294901760
  %2471 = vmatpush1.xpose.msra.mxu0 %v2470
  %v2472 = vand.u32 %v1723, 4294901760
  %v2473 = vsub.f32 %v1723, %v2472
  %v2474 = vand.u32 %v2473, 4294901760
  %2475 = vmatprep.subr.mxu0 %v2474
  %v2476 = vand.u32 %v1722, 4294901760
  %v2477 = vsub.f32 %v1722, %v2476
  %v2478 = vand.u32 %v2477, 4294901760
  %2479 = vmatpush1.xpose.msra.mxu0 %v2478
  %v2480 = vand.u32 %v1721, 4294901760
  %v2481 = vsub.f32 %v1721, %v2480
  %v2482 = vand.u32 %v2481, 4294901760
  %2483 = vmatprep.subr.mxu0 %v2482
  %v2484 = vand.u32 %v1720, 4294901760
  %v2485 = vsub.f32 %v1720, %v2484
  %v2486 = vand.u32 %v2485, 4294901760
  %2487 = vmatpush1.xpose.msra.mxu0 %v2486
  %v2488 = vand.u32 %v1719, 4294901760
  %v2489 = vsub.f32 %v1719, %v2488
  %v2490 = vand.u32 %v2489, 4294901760
  %2491 = vmatprep.subr.mxu0 %v2490
  %v2492 = vand.u32 %v1718, 4294901760
  %v2493 = vsub.f32 %v1718, %v2492
  %v2494 = vand.u32 %v2493, 4294901760
  %2495 = vmatpush1.xpose.msra.mxu0 %v2494
  %v2496 = vand.u32 %v1717, 4294901760
  %v2497 = vsub.f32 %v1717, %v2496
  %v2498 = vand.u32 %v2497, 4294901760
  %2499 = vmatprep.subr.mxu0 %v2498
  %v2500 = vand.u32 %v1716, 4294901760
  %v2501 = vsub.f32 %v1716, %v2500
  %v2502 = vand.u32 %v2501, 4294901760
  %2503 = vmatpush1.xpose.msra.mxu0 %v2502
  %v2504 = vand.u32 %v1715, 4294901760
  %v2505 = vsub.f32 %v1715, %v2504
  %v2506 = vand.u32 %v2505, 4294901760
  %2507 = vmatprep.subr.mxu0 %v2506
  %v2508 = vand.u32 %v1714, 4294901760
  %v2509 = vsub.f32 %v1714, %v2508
  %v2510 = vand.u32 %v2509, 4294901760
  %2511 = vmatpush1.xpose.msra.mxu0 %v2510
  %v2512 = vand.u32 %v1713, 4294901760
  %v2513 = vsub.f32 %v1713, %v2512
  %v2514 = vand.u32 %v2513, 4294901760
  %2515 = vmatprep.subr.mxu0 %v2514
  %v2516 = vand.u32 %v1712, 4294901760
  %v2517 = vsub.f32 %v1712, %v2516
  %v2518 = vand.u32 %v2517, 4294901760
  %2519 = vmatpush1.xpose.msra.mxu0 %v2518
  %v2520 = vand.u32 %v1711, 4294901760
  %v2521 = vsub.f32 %v1711, %v2520
  %v2522 = vand.u32 %v2521, 4294901760
  %2523 = vmatprep.subr.mxu0 %v2522
  %v2524 = vand.u32 %v1710, 4294901760
  %v2525 = vsub.f32 %v1710, %v2524
  %v2526 = vand.u32 %v2525, 4294901760
  %2527 = vmatpush1.xpose.msra.mxu0 %v2526
  %v2528 = vand.u32 %v1709, 4294901760
  %v2529 = vsub.f32 %v1709, %v2528
  %v2530 = vand.u32 %v2529, 4294901760
  %2531 = vmatprep.subr.mxu0 %v2530
  %v2532 = vand.u32 %v1708, 4294901760
  %v2533 = vsub.f32 %v1708, %v2532
  %v2534 = vand.u32 %v2533, 4294901760
  %2535 = vmatpush1.xpose.msra.mxu0 %v2534
  %v2536 = vand.u32 %v1707, 4294901760
  %v2537 = vsub.f32 %v1707, %v2536
  %v2538 = vand.u32 %v2537, 4294901760
  %2539 = vmatprep.subr.mxu0 %v2538
  %v2540 = vand.u32 %v1706, 4294901760
  %v2541 = vsub.f32 %v1706, %v2540
  %v2542 = vand.u32 %v2541, 4294901760
  %2543 = vmatpush1.xpose.msra.mxu0 %v2542
  %v2544 = vand.u32 %v1705, 4294901760
  %v2545 = vsub.f32 %v1705, %v2544
  %v2546 = vand.u32 %v2545, 4294901760
  %2547 = vmatprep.subr.mxu0 %v2546
  %v2548 = vand.u32 %v1704, 4294901760
  %v2549 = vsub.f32 %v1704, %v2548
  %v2550 = vand.u32 %v2549, 4294901760
  %2551 = vmatpush1.xpose.msra.mxu0 %v2550
  %v2552 = vand.u32 %v1703, 4294901760
  %v2553 = vsub.f32 %v1703, %v2552
  %v2554 = vand.u32 %v2553, 4294901760
  %2555 = vmatprep.subr.mxu0 %v2554
  %v2556 = vand.u32 %v1702, 4294901760
  %v2557 = vsub.f32 %v1702, %v2556
  %v2558 = vand.u32 %v2557, 4294901760
  %2559 = vmatpush1.xpose.msra.mxu0 %v2558
  %2560 = vmatprep.subr.mxu0 0.0
  %2561 = vmatpush2.xpose.msra.mxu0 0.0
  %2562 = vmatprep.subr.mxu0 0.0
  %2563 = vmatpush2.xpose.msra.mxu0 0.0
  %2564 = vmatprep.subr.mxu0 0.0
  %2565 = vmatpush2.xpose.msra.mxu0 0.0
  %2566 = vmatprep.subr.mxu0 0.0
  %2567 = vmatpush2.xpose.msra.mxu0 0.0
  %2568 = vmatprep.subr.mxu0 0.0
  %2569 = vmatpush2.xpose.msra.mxu0 0.0
  %2570 = vmatprep.subr.mxu0 0.0
  %2571 = vmatpush2.xpose.msra.mxu0 0.0
  %2572 = vmatprep.subr.mxu0 0.0
  %2573 = vmatpush2.xpose.msra.mxu0 0.0
  %2574 = vmatprep.subr.mxu0 0.0
  %2575 = vmatpush2.xpose.msra.mxu0 0.0
  %2576 = vmatprep.subr.mxu0 0.0
  %2577 = vmatpush2.xpose.msra.mxu0 0.0
  %2578 = vmatprep.subr.mxu0 0.0
  %2579 = vmatpush2.xpose.msra.mxu0 0.0
  %2580 = vmatprep.subr.mxu0 0.0
  %2581 = vmatpush2.xpose.msra.mxu0 0.0
  %2582 = vmatprep.subr.mxu0 0.0
  %2583 = vmatpush2.xpose.msra.mxu0 0.0
  %2584 = vmatprep.subr.mxu0 0.0
  %2585 = vmatpush2.xpose.msra.mxu0 0.0
  %2586 = vmatprep.subr.mxu0 0.0
  %2587 = vmatpush2.xpose.msra.mxu0 0.0
  %2588 = vmatprep.subr.mxu0 0.0
  %2589 = vmatpush2.xpose.msra.mxu0 0.0
  %2590 = vmatprep.subr.mxu0 0.0
  %2591 = vmatpush2.xpose.msra.mxu0 0.0
  %v2592 = vand.u32 %v1735, 4294901760
  %2593 = vmatprep.mubr.f32.mxu0 %v2592
  %v2594 = vand.u32 %v1734, 4294901760
  %2595 = vmatmul.mubr.f32.gmra.mxu0 %v2594
  %v2596 = vpop.f32.mrf.mxu0
  %v2597 = vadd.f32 %v2407, %v2596
  %v2598 = vpop.f32.mrf.mxu0
  %v2599 = vand.u32 %v1737, 4294901760
  %2600 = vmatprep.mubr.f32.mxu0 %v2599
  %v2601 = vand.u32 %v1736, 4294901760
  %2602 = vmatmul.mubr.f32.gmra.mxu0 %v2601
  %v2603 = vpop.f32.mrf.mxu0
  %v2604 = vadd.f32 %v2418, %v2603
  %v2605 = vpop.f32.mrf.mxu0
  %v2606 = vand.u32 %v1739, 4294901760
  %2607 = vmatprep.mubr.f32.mxu0 %v2606
  %v2608 = vand.u32 %v1738, 4294901760
  %2609 = vmatmul.mubr.f32.gmra.mxu0 %v2608
  %v2610 = vpop.f32.mrf.mxu0
  %v2611 = vadd.f32 %v2429, %v2610
  %v2612 = vpop.f32.mrf.mxu0
  %2613 = vdwg.mxu0
  %v2614 = vand.u32 %v1733, 4294901760
  %2615 = vmatprep.subr.mxu0 %v2614
  %v2616 = vand.u32 %v1732, 4294901760
  %2617 = vmatpush1.xpose.msra.mxu0 %v2616
  %v2618 = vand.u32 %v1731, 4294901760
  %2619 = vmatprep.subr.mxu0 %v2618
  %v2620 = vand.u32 %v1730, 4294901760
  %2621 = vmatpush1.xpose.msra.mxu0 %v2620
  %v2622 = vand.u32 %v1729, 4294901760
  %2623 = vmatprep.subr.mxu0 %v2622
  %v2624 = vand.u32 %v1728, 4294901760
  %2625 = vmatpush1.xpose.msra.mxu0 %v2624
  %v2626 = vand.u32 %v1727, 4294901760
  %2627 = vmatprep.subr.mxu0 %v2626
  %v2628 = vand.u32 %v1726, 4294901760
  %2629 = vmatpush1.xpose.msra.mxu0 %v2628
  %v2630 = vand.u32 %v1725, 4294901760
  %2631 = vmatprep.subr.mxu0 %v2630
  %v2632 = vand.u32 %v1724, 4294901760
  %2633 = vmatpush1.xpose.msra.mxu0 %v2632
  %v2634 = vand.u32 %v1723, 4294901760
  %2635 = vmatprep.subr.mxu0 %v2634
  %v2636 = vand.u32 %v1722, 4294901760
  %2637 = vmatpush1.xpose.msra.mxu0 %v2636
  %v2638 = vand.u32 %v1721, 4294901760
  %2639 = vmatprep.subr.mxu0 %v2638
  %v2640 = vand.u32 %v1720, 4294901760
  %2641 = vmatpush1.xpose.msra.mxu0 %v2640
  %v2642 = vand.u32 %v1719, 4294901760
  %2643 = vmatprep.subr.mxu0 %v2642
  %v2644 = vand.u32 %v1718, 4294901760
  %2645 = vmatpush1.xpose.msra.mxu0 %v2644
  %v2646 = vand.u32 %v1717, 4294901760
  %2647 = vmatprep.subr.mxu0 %v2646
  %v2648 = vand.u32 %v1716, 4294901760
  %2649 = vmatpush1.xpose.msra.mxu0 %v2648
  %v2650 = vand.u32 %v1715, 4294901760
  %2651 = vmatprep.subr.mxu0 %v2650
  %v2652 = vand.u32 %v1714, 4294901760
  %2653 = vmatpush1.xpose.msra.mxu0 %v2652
  %v2654 = vand.u32 %v1713, 4294901760
  %2655 = vmatprep.subr.mxu0 %v2654
  %v2656 = vand.u32 %v1712, 4294901760
  %2657 = vmatpush1.xpose.msra.mxu0 %v2656
  %v2658 = vand.u32 %v1711, 4294901760
  %2659 = vmatprep.subr.mxu0 %v2658
  %v2660 = vand.u32 %v1710, 4294901760
  %2661 = vmatpush1.xpose.msra.mxu0 %v2660
  %v2662 = vand.u32 %v1709, 4294901760
  %2663 = vmatprep.subr.mxu0 %v2662
  %v2664 = vand.u32 %v1708, 4294901760
  %2665 = vmatpush1.xpose.msra.mxu0 %v2664
  %v2666 = vand.u32 %v1707, 4294901760
  %2667 = vmatprep.subr.mxu0 %v2666
  %v2668 = vand.u32 %v1706, 4294901760
  %2669 = vmatpush1.xpose.msra.mxu0 %v2668
  %v2670 = vand.u32 %v1705, 4294901760
  %2671 = vmatprep.subr.mxu0 %v2670
  %v2672 = vand.u32 %v1704, 4294901760
  %2673 = vmatpush1.xpose.msra.mxu0 %v2672
  %v2674 = vand.u32 %v1703, 4294901760
  %2675 = vmatprep.subr.mxu0 %v2674
  %v2676 = vand.u32 %v1702, 4294901760
  %2677 = vmatpush1.xpose.msra.mxu0 %v2676
  %2678 = vmatprep.subr.mxu0 0.0
  %2679 = vmatpush2.xpose.msra.mxu0 0.0
  %2680 = vmatprep.subr.mxu0 0.0
  %2681 = vmatpush2.xpose.msra.mxu0 0.0
  %2682 = vmatprep.subr.mxu0 0.0
  %2683 = vmatpush2.xpose.msra.mxu0 0.0
  %2684 = vmatprep.subr.mxu0 0.0
  %2685 = vmatpush2.xpose.msra.mxu0 0.0
  %2686 = vmatprep.subr.mxu0 0.0
  %2687 = vmatpush2.xpose.msra.mxu0 0.0
  %2688 = vmatprep.subr.mxu0 0.0
  %2689 = vmatpush2.xpose.msra.mxu0 0.0
  %2690 = vmatprep.subr.mxu0 0.0
  %2691 = vmatpush2.xpose.msra.mxu0 0.0
  %2692 = vmatprep.subr.mxu0 0.0
  %2693 = vmatpush2.xpose.msra.mxu0 0.0
  %2694 = vmatprep.subr.mxu0 0.0
  %2695 = vmatpush2.xpose.msra.mxu0 0.0
  %2696 = vmatprep.subr.mxu0 0.0
  %2697 = vmatpush2.xpose.msra.mxu0 0.0
  %2698 = vmatprep.subr.mxu0 0.0
  %2699 = vmatpush2.xpose.msra.mxu0 0.0
  %2700 = vmatprep.subr.mxu0 0.0
  %2701 = vmatpush2.xpose.msra.mxu0 0.0
  %2702 = vmatprep.subr.mxu0 0.0
  %2703 = vmatpush2.xpose.msra.mxu0 0.0
  %2704 = vmatprep.subr.mxu0 0.0
  %2705 = vmatpush2.xpose.msra.mxu0 0.0
  %2706 = vmatprep.subr.mxu0 0.0
  %2707 = vmatpush2.xpose.msra.mxu0 0.0
  %2708 = vmatprep.subr.mxu0 0.0
  %2709 = vmatpush2.xpose.msra.mxu0 0.0
  %v2710 = vand.u32 %v1735, 4294901760
  %2711 = vmatprep.mubr.f32.mxu0 %v2710
  %v2712 = vand.u32 %v1734, 4294901760
  %2713 = vmatmul.mubr.f32.gmra.mxu0 %v2712
  %v2714 = vpop.f32.mrf.mxu0
  %v2715 = vadd.f32 %v2597, %v2714
  %v2716 = vpop.f32.mrf.mxu0
  %v2717 = vand.u32 %v1737, 4294901760
  %2718 = vmatprep.mubr.f32.mxu0 %v2717
  %v2719 = vand.u32 %v1736, 4294901760
  %2720 = vmatmul.mubr.f32.gmra.mxu0 %v2719
  %v2721 = vpop.f32.mrf.mxu0
  %v2722 = vadd.f32 %v2604, %v2721
  %v2723 = vpop.f32.mrf.mxu0
  %v2724 = vand.u32 %v1739, 4294901760
  %2725 = vmatprep.mubr.f32.mxu0 %v2724
  %v2726 = vand.u32 %v1738, 4294901760
  %2727 = vmatmul.mubr.f32.gmra.mxu0 %v2726
  %v2728 = vpop.f32.mrf.mxu0
  %v2729 = vadd.f32 %v2611, %v2728
  %v2730 = vpop.f32.mrf.mxu0
  %2731 = vdwg.mxu0
  %2732 = vst [vmem:[%s5] sm:$0xff] %v2715
  %2733 = vst [vmem:[%s5 + $0x8] sm:$0xff] %v2722
  %2734 = vst [vmem:[%s5 + $0x10] sm:$0xff] %v2729
  // Predicated region
  $region22: #{generator_forward.1} parent=0 // pred_check
    _
  $region23: #{generator_forward.1} parent=0 // pred_check_branch
    %2736 = sbr.rel (0) target = $region25
  $region24: #{generator_forward.1} parent=0 // pred_region
    _
  $region25: #{generator_forward.1} parent=0 // pred_fallthru
    _
  // Predicated region
  $region26: #{generator_forward.1} parent=0 // pred_check
    _
  $region27: #{generator_forward.1} parent=0 // pred_check_branch
    %2738 = sbr.rel (0) target = $region29
  $region28: #{generator_forward.1} parent=0 // pred_region
    _
  $region29: #{generator_forward.1} parent=0 // pred_fallthru
    _

</llo_original>
